<compile_context>
chip_gen: v7x
topology: tpu7x:2x2x1
jax: 0.10.0
libtpu: 0.0.40
codegen_flags: <defaults>
</compile_context>

<pallas_src>
import functools

import jax
import jax.numpy as jnp
from jax.experimental import pallas as pl
from jax.experimental.pallas import tpu as pltpu

H1 = 600
H2 = 100
LANE = 128


def _round_up(n, m):
    return ((n + m - 1) // m) * m


def _mlp_kernel(x_ref, w1_ref, b1_ref, w2_ref, b2_ref, w3_ref, b3_ref, o_ref):
    """Fused 3-layer MLP for one batch tile. bf16 MXU operands, fp32 accumulate."""
    x = x_ref[...]  # bf16 (block_m, F_pad)

    h1 = jnp.dot(x, w1_ref[...], preferred_element_type=jnp.float32) + b1_ref[...]
    h1 = jnp.maximum(h1, 0.0)  # ReLU, fp32 on the VPU

    h2 = jnp.dot(h1.astype(jnp.bfloat16), w2_ref[...],
                 preferred_element_type=jnp.float32) + b2_ref[...]
    h2 = jnp.maximum(h2, 0.0)  # ReLU

    out = jnp.dot(h2.astype(jnp.bfloat16), w3_ref[...],
                  preferred_element_type=jnp.float32) + b3_ref[...]
    o_ref[...] = out.astype(o_ref.dtype)  # lane-dense (block_m, 128) store


@functools.partial(jax.jit, static_argnames=("out_size", "block_m"))
def light_mlp_forward(x, w1, b1, w2, b2, w3, b3, *, out_size, block_m=256):
    """LightMLP forward pass with a fused Pallas kernel tiled over the batch.

    Expects padded/packed params from `pack_params` (bf16 weights, fp32 biases).
    Returns fp32 output of shape (B, out_size).
    """
    B, F = x.shape
    F_pad, H1P = w1.shape
    H2P = w2.shape[1]
    OUTP = w3.shape[1]

    # K-pad the input features to the stored (padded) weight layout.
    if F_pad != F:
        x = jnp.pad(x, ((0, 0), (0, F_pad - F)))
    x_bf = x.astype(jnp.bfloat16)

    bm = min(block_m, B)              # full-dim block is always legal
    grid = (pl.cdiv(B, bm),)

    flops = 2 * B * (F_pad * H1P + H1P * H2P + H2P * OUTP)
    bytes_accessed = (
        B * F_pad * 2                                  # x (bf16)
        + (w1.size + w2.size + w3.size) * 2            # weights (bf16)
        + (b1.size + b2.size + b3.size) * 4            # biases (f32)
        + B * OUTP * 4                                 # output (f32)
    )

    out_padded = pl.pallas_call(
        _mlp_kernel,
        out_shape=jax.ShapeDtypeStruct((B, OUTP), jnp.float32),
        grid_spec=pltpu.PrefetchScalarGridSpec(
            num_scalar_prefetch=0,
            grid=grid,
            in_specs=[
                pl.BlockSpec((bm, F_pad), lambda i: (i, 0)),    # x tile
                pl.BlockSpec((F_pad, H1P), lambda i: (0, 0)),   # w1 (full, resident)
                pl.BlockSpec((1, H1P), lambda i: (0, 0)),       # b1
                pl.BlockSpec((H1P, H2P), lambda i: (0, 0)),     # w2 (full, resident)
                pl.BlockSpec((1, H2P), lambda i: (0, 0)),       # b2
                pl.BlockSpec((H2P, OUTP), lambda i: (0, 0)),    # w3 (full, resident)
                pl.BlockSpec((1, OUTP), lambda i: (0, 0)),      # b3
            ],
            out_specs=pl.BlockSpec((bm, OUTP), lambda i: (i, 0)),
        ),
        compiler_params=pltpu.CompilerParams(
            dimension_semantics=("parallel",),
        ),
        cost_estimate=pl.CostEstimate(
            flops=flops, transcendentals=0, bytes_accessed=bytes_accessed),
    )(x_bf, w1, b1, w2, b2, w3, b3)

    # Strip the zero-padded output lanes (free-ish XLA slice).
    return out_padded[:, :out_size]


def init_params(key, num_feature, output_size, dtype=jnp.float32):
    """Deterministic fp32 params in (in, out) layout (== PyTorch weight.T)."""
    keys = jax.random.split(key, 6)

    def linear(kw, kb, fan_in, fan_out):
        bound = 1.0 / jnp.sqrt(jnp.asarray(fan_in, dtype))
        w = jax.random.uniform(kw, (fan_in, fan_out), dtype, -bound, bound)
        b = jax.random.uniform(kb, (fan_out,), dtype, -bound, bound)
        return w, b

    w1, b1 = linear(keys[0], keys[1], num_feature, H1)
    w2, b2 = linear(keys[2], keys[3], H1, H2)
    w3, b3 = linear(keys[4], keys[5], H2, output_size)
    return w1, b1, w2, b2, w3, b3


def pack_params(w1, b1, w2, b2, w3, b3):
    """Zero-pad dims to multiples of 128 and cast weights to bf16 (biases fp32).

    Padding is mathematically a no-op: ReLU(0)=0 and zero weight rows/cols
    contribute nothing; padded output columns are sliced off in the wrapper.
    """
    F = w1.shape[0]
    out_size = w3.shape[1]
    F_pad = _round_up(F, LANE)
    H1P = _round_up(H1, LANE)
    H2P = _round_up(H2, LANE)
    OUTP = _round_up(out_size, LANE)

    w1p = jnp.zeros((F_pad, H1P), jnp.bfloat16).at[:F, :H1].set(w1.astype(jnp.bfloat16))
    b1p = jnp.zeros((1, H1P), jnp.float32).at[0, :H1].set(b1.astype(jnp.float32))
    w2p = jnp.zeros((H1P, H2P), jnp.bfloat16).at[:H1, :H2].set(w2.astype(jnp.bfloat16))
    b2p = jnp.zeros((1, H2P), jnp.float32).at[0, :H2].set(b2.astype(jnp.float32))
    w3p = jnp.zeros((H2P, OUTP), jnp.bfloat16).at[:H2, :out_size].set(w3.astype(jnp.bfloat16))
    b3p = jnp.zeros((1, OUTP), jnp.float32).at[0, :out_size].set(b3.astype(jnp.float32))
    return w1p, b1p, w2p, b2p, w3p, b3p


def reference_forward(x, w1, b1, w2, b2, w3, b3):
    """Pure-JAX reference with the same bf16-operand / fp32-accumulate arithmetic."""
    def mm(a, w):
        return jnp.dot(a.astype(jnp.bfloat16), w.astype(jnp.bfloat16),
                       preferred_element_type=jnp.float32)

    h1 = jnp.maximum(mm(x, w1) + b1, 0.0)
    h2 = jnp.maximum(mm(h1, w2) + b2, 0.0)
    return mm(h2, w3) + b3


if __name__ == "__main__":
    num_feature = 32
    output_size = 10
    batch = 256            # small test batch; block_m=128 -> 2 grid steps (2 TCs on v7x)

    key = jax.random.PRNGKey(0)
    kx, kp = jax.random.split(key)

    x = jax.random.normal(kx, (batch, num_feature), jnp.float32)
    params = init_params(kp, num_feature, output_size)
    packed = pack_params(*params)

    out = light_mlp_forward(x, *packed, out_size=output_size, block_m=128)
    out = jax.block_until_ready(out)

    ref = reference_forward(x, *params)
    assert out.shape == (batch, output_size), out.shape
    # bf16 MXU operands -> compare at bf16-appropriate tolerance.
    assert jnp.allclose(out, ref, atol=1e-2, rtol=1e-2), "mismatch vs reference"

    print("KERNEL_OK")
</pallas_src>

<mosaic_0001>
module attributes {stable_mosaic.version = 11 : i64} {
  func.func @_mlp_kernel(%arg0: i32, %arg1: memref<128x128xbf16, #tpu.memory_space<vmem>>, %arg2: memref<128x640xbf16, #tpu.memory_space<vmem>>, %arg3: memref<1x640xf32, #tpu.memory_space<vmem>>, %arg4: memref<640x128xbf16, #tpu.memory_space<vmem>>, %arg5: memref<1x128xf32, #tpu.memory_space<vmem>>, %arg6: memref<128x128xbf16, #tpu.memory_space<vmem>>, %arg7: memref<1x128xf32, #tpu.memory_space<vmem>>, %arg8: memref<128x128xf32, #tpu.memory_space<vmem>>) attributes {dimension_semantics = [#tpu.dimension_semantics<parallel>], iteration_bounds = array<i64: 2>, scalar_prefetch = 0 : i64, scratch_operands = 0 : i64, tpu.core_type = #tpu.core_type<tc>, window_params = [{transform_indices = @transform_0, window_bounds = array<i64: 128, 128>}, {pipeline_mode = #tpu.pipeline_mode<synchronous>, transform_indices = @transform_1, window_bounds = array<i64: 128, 640>}, {pipeline_mode = #tpu.pipeline_mode<synchronous>, transform_indices = @transform_2, window_bounds = array<i64: 1, 640>}, {pipeline_mode = #tpu.pipeline_mode<synchronous>, transform_indices = @transform_3, window_bounds = array<i64: 640, 128>}, {pipeline_mode = #tpu.pipeline_mode<synchronous>, transform_indices = @transform_4, window_bounds = array<i64: 1, 128>}, {pipeline_mode = #tpu.pipeline_mode<synchronous>, transform_indices = @transform_5, window_bounds = array<i64: 128, 128>}, {pipeline_mode = #tpu.pipeline_mode<synchronous>, transform_indices = @transform_6, window_bounds = array<i64: 1, 128>}, {transform_indices = @transform_7, window_bounds = array<i64: 128, 128>}]} {
    %c0 = arith.constant 0 : index
    %c0_0 = arith.constant 0 : index
    %0 = vector.load %arg1[%c0, %c0_0] : memref<128x128xbf16, #tpu.memory_space<vmem>>, vector<128x128xbf16>
    %c0_1 = arith.constant 0 : index
    %c0_2 = arith.constant 0 : index
    %1 = vector.load %arg2[%c0_1, %c0_2] : memref<128x640xbf16, #tpu.memory_space<vmem>>, vector<128x640xbf16>
    %cst = arith.constant dense<0.000000e+00> : vector<128x640xf32>
    %2 = tpu.matmul %0, %1, %cst {dimension_numbers = #tpu.dot_dimension_numbers<[1], [0], [0], [1], [0, 0, 1, 1], [], []>} : vector<128x128xbf16>, vector<128x640xbf16>, vector<128x640xf32> -> vector<128x640xf32>
    %c0_3 = arith.constant 0 : index
    %c0_4 = arith.constant 0 : index
    %3 = vector.load %arg3[%c0_3, %c0_4] : memref<1x640xf32, #tpu.memory_space<vmem>>, vector<1x640xf32>
    %4 = vector.broadcast %3 : vector<1x640xf32> to vector<128x640xf32>
    %5 = arith.addf %2, %4 : vector<128x640xf32>
    %cst_5 = arith.constant 0.000000e+00 : f32
    %6 = vector.broadcast %cst_5 : f32 to vector<128x640xf32>
    %7 = arith.maximumf %5, %6 : vector<128x640xf32>
    %8 = arith.truncf %7 : vector<128x640xf32> to vector<128x640xbf16>
    %c0_6 = arith.constant 0 : index
    %c0_7 = arith.constant 0 : index
    %9 = vector.load %arg4[%c0_6, %c0_7] : memref<640x128xbf16, #tpu.memory_space<vmem>>, vector<640x128xbf16>
    %cst_8 = arith.constant dense<0.000000e+00> : vector<128x128xf32>
    %10 = tpu.matmul %8, %9, %cst_8 {dimension_numbers = #tpu.dot_dimension_numbers<[1], [0], [0], [1], [0, 0, 1, 1], [], []>} : vector<128x640xbf16>, vector<640x128xbf16>, vector<128x128xf32> -> vector<128x128xf32>
    %c0_9 = arith.constant 0 : index
    %c0_10 = arith.constant 0 : index
    %11 = vector.load %arg5[%c0_9, %c0_10] : memref<1x128xf32, #tpu.memory_space<vmem>>, vector<1x128xf32>
    %12 = vector.broadcast %11 : vector<1x128xf32> to vector<128x128xf32>
    %13 = arith.addf %10, %12 : vector<128x128xf32>
    %cst_11 = arith.constant 0.000000e+00 : f32
    %14 = vector.broadcast %cst_11 : f32 to vector<128x128xf32>
    %15 = arith.maximumf %13, %14 : vector<128x128xf32>
    %16 = arith.truncf %15 : vector<128x128xf32> to vector<128x128xbf16>
    %c0_12 = arith.constant 0 : index
    %c0_13 = arith.constant 0 : index
    %17 = vector.load %arg6[%c0_12, %c0_13] : memref<128x128xbf16, #tpu.memory_space<vmem>>, vector<128x128xbf16>
    %cst_14 = arith.constant dense<0.000000e+00> : vector<128x128xf32>
    %18 = tpu.matmul %16, %17, %cst_14 {dimension_numbers = #tpu.dot_dimension_numbers<[1], [0], [0], [1], [0, 0, 1, 1], [], []>} : vector<128x128xbf16>, vector<128x128xbf16>, vector<128x128xf32> -> vector<128x128xf32>
    %c0_15 = arith.constant 0 : index
    %c0_16 = arith.constant 0 : index
    %19 = vector.load %arg7[%c0_15, %c0_16] : memref<1x128xf32, #tpu.memory_space<vmem>>, vector<1x128xf32>
    %20 = vector.broadcast %19 : vector<1x128xf32> to vector<128x128xf32>
    %21 = arith.addf %18, %20 : vector<128x128xf32>
    %c0_17 = arith.constant 0 : index
    %c0_18 = arith.constant 0 : index
    %22 = vector.load %arg8[%c0_17, %c0_18] : memref<128x128xf32, #tpu.memory_space<vmem>>, vector<128x128xf32>
    tpu.vector_store %arg8[%c0_17, %c0_18], %21 {strides = array<i32>} : memref<128x128xf32, #tpu.memory_space<vmem>>, vector<128x128xf32>,
    return
  }
  func.func @transform_0(%arg0: i32) -> (i32, i32) {
    %c0_i32 = arith.constant 0 : i32
    %c0_i32_0 = arith.constant 0 : i32
    return %arg0, %c0_i32 : i32, i32
  }
  func.func @transform_1(%arg0: i32) -> (i32, i32) {
    %c0_i32 = arith.constant 0 : i32
    %c0_i32_0 = arith.constant 0 : i32
    %c0_i32_1 = arith.constant 0 : i32
    return %c0_i32, %c0_i32_0 : i32, i32
  }
  func.func @transform_2(%arg0: i32) -> (i32, i32) {
    %c0_i32 = arith.constant 0 : i32
    %c0_i32_0 = arith.constant 0 : i32
    %c0_i32_1 = arith.constant 0 : i32
    return %c0_i32, %c0_i32_0 : i32, i32
  }
  func.func @transform_3(%arg0: i32) -> (i32, i32) {
    %c0_i32 = arith.constant 0 : i32
    %c0_i32_0 = arith.constant 0 : i32
    %c0_i32_1 = arith.constant 0 : i32
    return %c0_i32, %c0_i32_0 : i32, i32
  }
  func.func @transform_4(%arg0: i32) -> (i32, i32) {
    %c0_i32 = arith.constant 0 : i32
    %c0_i32_0 = arith.constant 0 : i32
    %c0_i32_1 = arith.constant 0 : i32
    return %c0_i32, %c0_i32_0 : i32, i32
  }
  func.func @transform_5(%arg0: i32) -> (i32, i32) {
    %c0_i32 = arith.constant 0 : i32
    %c0_i32_0 = arith.constant 0 : i32
    %c0_i32_1 = arith.constant 0 : i32
    return %c0_i32, %c0_i32_0 : i32, i32
  }
  func.func @transform_6(%arg0: i32) -> (i32, i32) {
    %c0_i32 = arith.constant 0 : i32
    %c0_i32_0 = arith.constant 0 : i32
    %c0_i32_1 = arith.constant 0 : i32
    return %c0_i32, %c0_i32_0 : i32, i32
  }
  func.func @transform_7(%arg0: i32) -> (i32, i32) {
    %c0_i32 = arith.constant 0 : i32
    %c0_i32_0 = arith.constant 0 : i32
    return %arg0, %c0_i32 : i32, i32
  }
}

</mosaic_0001>

<llo_original>
// kernel: light_mlp_forward.1
$region0: #{light_mlp_forward.1}
  #allocation0 [shape = 'u32[]', space=smem, size = 0x4, offset = 0x4, fixed_abs, tag = 'smem constant byte address 0x4 - core index']
  #allocation1 [shape = 'u32[144,128]{1,0:T(1,128)}', space=vmem, size = 0x12000, scoped, tag = 'internal scratch']
  %s0 = inlined_call_operand.vmem [shape: bf16[256,128], index: 0, kind: input, shape index: {}]
  %s1 = inlined_call_operand.vmem [shape: bf16[128,640], index: 1, kind: input, shape index: {}]
  %s2 = inlined_call_operand.vmem [shape: f32[1,640], index: 2, kind: input, shape index: {}]
  %s3 = inlined_call_operand.hbm [shape: bf16[640,128], index: 3, kind: input, shape index: {}]
  %s4 = inlined_call_operand.vmem [shape: f32[1,128], index: 4, kind: input, shape index: {}]
  %s5 = inlined_call_operand.vmem [shape: bf16[128,128], index: 5, kind: input, shape index: {}]
  %s6 = inlined_call_operand.vmem [shape: f32[1,128], index: 6, kind: input, shape index: {}]
  %s7 = inlined_call_operand.vmem [shape: f32[256,128], index: 7, kind: output, shape index: {}]
  %s8 = sld [smem:[#allocation0]]
  $region65: #{light_mlp_forward.1} parent=0
    _
  %s10 = ssub.s32 1, %s8
  %s11 = scalar_select 0, %s10, %s8
  $region1: #{light_mlp_forward.1} parent=0
    #allocation2 [shape = 'u8[163840]{0}', space=vmem, size = 0x28000, scoped, tag = 'input window, operand 3, single buffered']
    #allocation3 [shape = 's32[2]{0}', space=sflag, size = 0x8, scoped, tag = 'scoped memory for light_mlp_forward.1']
    %12 = vsyncpa [#allocation3], 0
    loop: start=0, step=1, limit=4
    $region2: #{light_mlp_forward.1} parent=1 // loop_pre_header
      _
    $region3: #{light_mlp_forward.1} parent=1 // loop_header
      %s14 = sphi 0, %s18
      %p15 = scmp.ge.s32.totalorder %s14, 4
      %s24 = sphi 0, %s26
      %s27 = sphi 0, %s24
      %s28 = sphi 0, %s27
      %s44 = sphi 0, %s28
      %s48 = sphi 0, %s48
      %s50 = sphi 0, %s48
      %s51 = sphi 0, %s50
      %s65 = sphi 0, %s51
      %s69 = sphi 0, %s69
      %s71 = sphi 0, %s69
      %s72 = sphi 0, %s71
      %s86 = sphi 0, %s72
      %s90 = sphi 0, %s90
      %s92 = sphi 0, %s90
      %s93 = sphi 0, %s92
      %s107 = sphi 0, %s93
      %s111 = sphi 0, %s111
      %s113 = sphi 0, %s111
      %s114 = sphi 0, %s113
      %s128 = sphi 0, %s114
      %s132 = sphi 0, %s132
      %s134 = sphi 0, %s132
      %s135 = sphi 0, %s134
      %s149 = sphi 0, %s135
      %s153 = sphi 0, %s153
      %s155 = sphi 0, %s153
      %s156 = sphi 0, %s155
      %s170 = sphi 0, %s156
      %s176 = sphi 0, %s178
      %s179 = sphi 0, %s176
      %s180 = sphi 0, %s179
      %s196 = sphi 0, %s180
    $region4: #{light_mlp_forward.1} parent=1 // loop_header_branch
      %17 = sbr.rel (%p15) target = $region8
    $region5: #{light_mlp_forward.1} parent=1 // loop_body
      %s19 = ssub.s32 %s14, 1
      %s20 = ssub.s32 %s14, 2
      %s21 = sadd.s32 %s14, 1
      %s22 = ssub.s32 %s14, %s21
      %p23 = scmp.eq.s32.totalorder %s22, 0
      %s25 = sadd.s32 %s24, 1
      %s26 = scalar_select %p23, %s24, %s25
      %p29 = pneg %p23
      %p30 = scmp.eq.s32.totalorder %s14, 1
      %p31 = por %p29, %p30
      %p32 = scmp.ne.s32.totalorder %s24, %s27
      %p33 = scmp.eq.s32.totalorder %s14, 0
      %p34 = por %p32, %p33
      %p35 = scmp.ne.s32.totalorder %s24, %s27
      %p36 = scmp.eq.s32.totalorder %s19, 1
      %p37 = por %p35, %p36
      %p38 = scmp.ne.s32.totalorder %s27, %s28
      %p39 = scmp.eq.s32.totalorder %s19, 0
      %p40 = por %p38, %p39
      %p41 = scmp.ne.s32.totalorder %s27, %s28
      %p42 = scmp.eq.s32.totalorder %s20, 1
      %p43 = por %p41, %p42
      %p45 = scmp.ne.s32.totalorder %s28, %s44
      %p46 = scmp.eq.s32.totalorder %s20, 0
      %p47 = por %p45, %p46
      %s49 = sadd.s32 %s48, 1
      %p52 = scmp.eq.s32.totalorder %s14, 1
      %p53 = scmp.ne.s32.totalorder %s48, %s50
      %p54 = scmp.eq.s32.totalorder %s14, 0
      %p55 = por %p53, %p54
      %p56 = scmp.ne.s32.totalorder %s48, %s50
      %p57 = scmp.eq.s32.totalorder %s19, 1
      %p58 = por %p56, %p57
      %p59 = scmp.ne.s32.totalorder %s50, %s51
      %p60 = scmp.eq.s32.totalorder %s19, 0
      %p61 = por %p59, %p60
      %p62 = scmp.ne.s32.totalorder %s50, %s51
      %p63 = scmp.eq.s32.totalorder %s20, 1
      %p64 = por %p62, %p63
      %p66 = scmp.ne.s32.totalorder %s51, %s65
      %p67 = scmp.eq.s32.totalorder %s20, 0
      %p68 = por %p66, %p67
      %s70 = sadd.s32 %s69, 1
      %p73 = scmp.eq.s32.totalorder %s14, 1
      %p74 = scmp.ne.s32.totalorder %s69, %s71
      %p75 = scmp.eq.s32.totalorder %s14, 0
      %p76 = por %p74, %p75
      %p77 = scmp.ne.s32.totalorder %s69, %s71
      %p78 = scmp.eq.s32.totalorder %s19, 1
      %p79 = por %p77, %p78
      %p80 = scmp.ne.s32.totalorder %s71, %s72
      %p81 = scmp.eq.s32.totalorder %s19, 0
      %p82 = por %p80, %p81
      %p83 = scmp.ne.s32.totalorder %s71, %s72
      %p84 = scmp.eq.s32.totalorder %s20, 1
      %p85 = por %p83, %p84
      %p87 = scmp.ne.s32.totalorder %s72, %s86
      %p88 = scmp.eq.s32.totalorder %s20, 0
      %p89 = por %p87, %p88
      %s91 = sadd.s32 %s90, 1
      %p94 = scmp.eq.s32.totalorder %s14, 1
      %p95 = scmp.ne.s32.totalorder %s90, %s92
      %p96 = scmp.eq.s32.totalorder %s14, 0
      %p97 = por %p95, %p96
      %p98 = scmp.ne.s32.totalorder %s90, %s92
      %p99 = scmp.eq.s32.totalorder %s19, 1
      %p100 = por %p98, %p99
      %p101 = scmp.ne.s32.totalorder %s92, %s93
      %p102 = scmp.eq.s32.totalorder %s19, 0
      %p103 = por %p101, %p102
      %p104 = scmp.ne.s32.totalorder %s92, %s93
      %p105 = scmp.eq.s32.totalorder %s20, 1
      %p106 = por %p104, %p105
      %p108 = scmp.ne.s32.totalorder %s93, %s107
      %p109 = scmp.eq.s32.totalorder %s20, 0
      %p110 = por %p108, %p109
      %s112 = sadd.s32 %s111, 1
      %p115 = scmp.eq.s32.totalorder %s14, 1
      %p116 = scmp.ne.s32.totalorder %s111, %s113
      %p117 = scmp.eq.s32.totalorder %s14, 0
      %p118 = por %p116, %p117
      %p119 = scmp.ne.s32.totalorder %s111, %s113
      %p120 = scmp.eq.s32.totalorder %s19, 1
      %p121 = por %p119, %p120
      %p122 = scmp.ne.s32.totalorder %s113, %s114
      %p123 = scmp.eq.s32.totalorder %s19, 0
      %p124 = por %p122, %p123
      %p125 = scmp.ne.s32.totalorder %s113, %s114
      %p126 = scmp.eq.s32.totalorder %s20, 1
      %p127 = por %p125, %p126
      %p129 = scmp.ne.s32.totalorder %s114, %s128
      %p130 = scmp.eq.s32.totalorder %s20, 0
      %p131 = por %p129, %p130
      %s133 = sadd.s32 %s132, 1
      %p136 = scmp.eq.s32.totalorder %s14, 1
      %p137 = scmp.ne.s32.totalorder %s132, %s134
      %p138 = scmp.eq.s32.totalorder %s14, 0
      %p139 = por %p137, %p138
      %p140 = scmp.ne.s32.totalorder %s132, %s134
      %p141 = scmp.eq.s32.totalorder %s19, 1
      %p142 = por %p140, %p141
      %p143 = scmp.ne.s32.totalorder %s134, %s135
      %p144 = scmp.eq.s32.totalorder %s19, 0
      %p145 = por %p143, %p144
      %p146 = scmp.ne.s32.totalorder %s134, %s135
      %p147 = scmp.eq.s32.totalorder %s20, 1
      %p148 = por %p146, %p147
      %p150 = scmp.ne.s32.totalorder %s135, %s149
      %p151 = scmp.eq.s32.totalorder %s20, 0
      %p152 = por %p150, %p151
      %s154 = sadd.s32 %s153, 1
      %p157 = scmp.eq.s32.totalorder %s14, 1
      %p158 = scmp.ne.s32.totalorder %s153, %s155
      %p159 = scmp.eq.s32.totalorder %s14, 0
      %p160 = por %p158, %p159
      %p161 = scmp.ne.s32.totalorder %s153, %s155
      %p162 = scmp.eq.s32.totalorder %s19, 1
      %p163 = por %p161, %p162
      %p164 = scmp.ne.s32.totalorder %s155, %s156
      %p165 = scmp.eq.s32.totalorder %s19, 0
      %p166 = por %p164, %p165
      %p167 = scmp.ne.s32.totalorder %s155, %s156
      %p168 = scmp.eq.s32.totalorder %s20, 1
      %p169 = por %p167, %p168
      %p171 = scmp.ne.s32.totalorder %s156, %s170
      %p172 = scmp.eq.s32.totalorder %s20, 0
      %p173 = por %p171, %p172
      %s174 = ssub.s32 %s14, %s21
      %p175 = scmp.eq.s32.totalorder %s174, 0
      %s177 = sadd.s32 %s176, 1
      %s178 = scalar_select %p175, %s176, %s177
      %p181 = pneg %p175
      %p182 = scmp.eq.s32.totalorder %s14, 1
      %p183 = por %p181, %p182
      %p184 = scmp.ne.s32.totalorder %s176, %s179
      %p185 = scmp.eq.s32.totalorder %s14, 0
      %p186 = por %p184, %p185
      %p187 = scmp.ne.s32.totalorder %s176, %s179
      %p188 = scmp.eq.s32.totalorder %s19, 1
      %p189 = por %p187, %p188
      %p190 = scmp.ne.s32.totalorder %s179, %s180
      %p191 = scmp.eq.s32.totalorder %s19, 0
      %p192 = por %p190, %p191
      %p193 = scmp.ne.s32.totalorder %s179, %s180
      %p194 = scmp.eq.s32.totalorder %s20, 1
      %p195 = por %p193, %p194
      %p197 = scmp.ne.s32.totalorder %s180, %s196
      %p198 = scmp.eq.s32.totalorder %s20, 0
      %p199 = por %p197, %p198
      %p200 = scmp.le.s32.totalorder 1, %s14
      %p201 = scmp.lt.s32.totalorder %s14, 3
      %p202 = pnand %p200, %p201
      %p203 = pneg %p202
      // Predicated region
      $region9: #{light_mlp_forward.1} parent=5 // pred_check
        _
      $region10: #{light_mlp_forward.1} parent=5 // pred_check_branch
        %205 = sbr.rel (%p202) target = $region12
      $region11: #{light_mlp_forward.1} parent=5 // pred_region
        %s206 = ssub.s32 %s14, 1
        // Predicated region
        $region13: #{light_mlp_forward.1} parent=11 // pred_check
          %p207 = pneg %p61
        $region14: #{light_mlp_forward.1} parent=11 // pred_check_branch
          %209 = sbr.rel (%p207) target = $region16
        $region15: #{light_mlp_forward.1} parent=11 // pred_region
          _
        $region16: #{light_mlp_forward.1} parent=11 // pred_fallthru
          _
        // Predicated region
        $region17: #{light_mlp_forward.1} parent=11 // pred_check
          %p210 = pneg %p82
        $region18: #{light_mlp_forward.1} parent=11 // pred_check_branch
          %212 = sbr.rel (%p210) target = $region20
        $region19: #{light_mlp_forward.1} parent=11 // pred_region
          _
        $region20: #{light_mlp_forward.1} parent=11 // pred_fallthru
          _
        // Predicated region
        $region21: #{light_mlp_forward.1} parent=11 // pred_check
          %p213 = pneg %p103
        $region22: #{light_mlp_forward.1} parent=11 // pred_check_branch
          %215 = sbr.rel (%p213) target = $region24
        $region23: #{light_mlp_forward.1} parent=11 // pred_region
          %s217 = ssub.s32 5120, 5120
          %218 = vsyncadd [#allocation3], %s217
          %s219 = sshll.u32 [#allocation2], 4
          %s220 = int_to_ptr.vmem [resolvable:$true] %s219
          %225 = dma.hbm_to_vmem [thread:$0]  %s3, 5120, %s220, [#allocation3], 64, 64, 4
        $region24: #{light_mlp_forward.1} parent=11 // pred_fallthru
          _
        // Predicated region
        $region25: #{light_mlp_forward.1} parent=11 // pred_check
          %p226 = pneg %p124
        $region26: #{light_mlp_forward.1} parent=11 // pred_check_branch
          %228 = sbr.rel (%p226) target = $region28
        $region27: #{light_mlp_forward.1} parent=11 // pred_region
          _
        $region28: #{light_mlp_forward.1} parent=11 // pred_fallthru
          _
        // Predicated region
        $region29: #{light_mlp_forward.1} parent=11 // pred_check
          %p229 = pneg %p145
        $region30: #{light_mlp_forward.1} parent=11 // pred_check_branch
          %231 = sbr.rel (%p229) target = $region32
        $region31: #{light_mlp_forward.1} parent=11 // pred_region
          _
        $region32: #{light_mlp_forward.1} parent=11 // pred_fallthru
          _
        // Predicated region
        $region33: #{light_mlp_forward.1} parent=11 // pred_check
          %p232 = pneg %p166
        $region34: #{light_mlp_forward.1} parent=11 // pred_check_branch
          %234 = sbr.rel (%p232) target = $region36
        $region35: #{light_mlp_forward.1} parent=11 // pred_region
          _
        $region36: #{light_mlp_forward.1} parent=11 // pred_fallthru
          _
      $region12: #{light_mlp_forward.1} parent=5 // pred_fallthru
        _
      %p235 = scmp.lt.s32.totalorder %s14, 2
      // Predicated region
      $region37: #{light_mlp_forward.1} parent=5 // pred_check
        %p236 = pneg %p235
      $region38: #{light_mlp_forward.1} parent=5 // pred_check_branch
        %238 = sbr.rel (%p236) target = $region40
      $region39: #{light_mlp_forward.1} parent=5 // pred_region
        // Predicated region
        $region41: #{light_mlp_forward.1} parent=39 // pred_check
          %p239 = pneg %p34
        $region42: #{light_mlp_forward.1} parent=39 // pred_check_branch
          %241 = sbr.rel (%p239) target = $region44
        $region43: #{light_mlp_forward.1} parent=39 // pred_region
          %s242 = smul.u32 16, %s14
          %p243 = scmp.lt.s32.totalorder %s242, 31
          %s244 = scalar_select %p243, %s242, 31
          %s245 = smul.addr %s244, 4
          %s246 = scalar_lea.vmem %s0, %s245
          %s247 = smul.u32 16, %s14
        $region44: #{light_mlp_forward.1} parent=39 // pred_fallthru
          _
      $region40: #{light_mlp_forward.1} parent=5 // pred_fallthru
        _
      %p248 = scmp.le.s32.totalorder 1, %s14
      %p249 = scmp.lt.s32.totalorder %s14, 3
      %p250 = pnand %p248, %p249
      %p251 = pneg %p250
      // Predicated region
      $region45: #{light_mlp_forward.1} parent=5 // pred_check
        _
      $region46: #{light_mlp_forward.1} parent=5 // pred_check_branch
        %253 = sbr.rel (%p250) target = $region48
      $region47: #{light_mlp_forward.1} parent=5 // pred_region
        %s254 = ssub.s32 %s14, 1
        // Predicated region
        $region49: #{light_mlp_forward.1} parent=47 // pred_check
          %p255 = pneg %p103
        $region50: #{light_mlp_forward.1} parent=47 // pred_check_branch
          %257 = sbr.rel (%p255) target = $region52
        $region51: #{light_mlp_forward.1} parent=47 // pred_region
          %258 = dma.done [#allocation3], 5120
        $region52: #{light_mlp_forward.1} parent=47 // pred_fallthru
          _
        %s259 = smul.u32 16, %s19
        %p260 = scmp.lt.s32.totalorder %s259, 31
        %s261 = scalar_select %p260, %s259, 31
        %s262 = smul.addr %s261, 4
        %s263 = scalar_lea.vmem %s0, %s262
        %p264 = pneg %p40
        %p265 = pneg %p37
        %p266 = pneg %p61
        %p267 = pneg %p58
        %p268 = pneg %p82
        %p269 = pneg %p79
        %p270 = pneg %p103
        %p271 = pneg %p100
        %p272 = pneg %p124
        %p273 = pneg %p121
        %p274 = pneg %p145
        %p275 = pneg %p142
        %p276 = pneg %p166
        %p277 = pneg %p163
        %p278 = pneg %p192
        %p279 = pneg %p189
        %s280 = smul.u32 16, %s19
        %p281 = scmp.lt.s32.totalorder %s280, 31
        %s282 = scalar_select %p281, %s280, 31
        %s283 = smul.addr %s282, 8
        %s284 = scalar_lea.vmem %s7, %s283
        %s285 = smul.u32 16, %s19
        %p286 = scmp.lt.s32.totalorder %s285, 31
        %s287 = scalar_select %p286, %s285, 31
        %s288 = smul.addr %s287, 4
        %s289 = scalar_lea.vmem %s0, %s288
        %s290 = smul.u32 16, %s19
        %s291 = smul.u32 16, %s19
        %p292 = scmp.lt.s32.totalorder %s291, 31
        %s293 = scalar_select %p292, %s291, 31
        %s294 = smul.addr %s293, 8
        %s295 = scalar_lea.vmem %s7, %s294
        %s296 = smul.u32 16, %s19
        %v298 = vld [vmem:[%s289] sm:$0xf]
        %v299 = vld [vmem:[%s289 + $0x4] sm:$0xf]
        %v300 = vld [vmem:[%s289 + $0x8] sm:$0xf]
        %v301 = vld [vmem:[%s289 + $0xc] sm:$0xf]
        %v302 = vld [vmem:[%s289 + $0x10] sm:$0xf]
        %v303 = vld [vmem:[%s289 + $0x14] sm:$0xf]
        %v304 = vld [vmem:[%s289 + $0x18] sm:$0xf]
        %v305 = vld [vmem:[%s289 + $0x1c] sm:$0xf]
        %v306 = vld [vmem:[%s289 + $0x20] sm:$0xf]
        %v307 = vld [vmem:[%s289 + $0x24] sm:$0xf]
        %v308 = vld [vmem:[%s289 + $0x28] sm:$0xf]
        %v309 = vld [vmem:[%s289 + $0x2c] sm:$0xf]
        %v310 = vld [vmem:[%s289 + $0x30] sm:$0xf]
        %v311 = vld [vmem:[%s289 + $0x34] sm:$0xf]
        %v312 = vld [vmem:[%s289 + $0x38] sm:$0xf]
        %v313 = vld [vmem:[%s289 + $0x3c] sm:$0xf]
        %v314 = vld [vmem:[%s1] sm:$0xff]
        %v315 = vld [vmem:[%s1 + $0x8] sm:$0xff]
        %v316 = vld [vmem:[%s1 + $0x10] sm:$0xf]
        %v317 = vld [vmem:[%s1 + $0x14] sm:$0xff]
        %v318 = vld [vmem:[%s1 + $0x1c] sm:$0xff]
        %v319 = vld [vmem:[%s1 + $0x24] sm:$0xf]
        %v320 = vld [vmem:[%s1 + $0x28] sm:$0xff]
        %v321 = vld [vmem:[%s1 + $0x30] sm:$0xff]
        %v322 = vld [vmem:[%s1 + $0x38] sm:$0xf]
        %v323 = vld [vmem:[%s1 + $0x3c] sm:$0xff]
        %v324 = vld [vmem:[%s1 + $0x44] sm:$0xff]
        %v325 = vld [vmem:[%s1 + $0x4c] sm:$0xf]
        %v326 = vld [vmem:[%s1 + $0x50] sm:$0xff]
        %v327 = vld [vmem:[%s1 + $0x58] sm:$0xff]
        %v328 = vld [vmem:[%s1 + $0x60] sm:$0xf]
        %v329 = vld [vmem:[%s1 + $0x64] sm:$0xff]
        %v330 = vld [vmem:[%s1 + $0x6c] sm:$0xff]
        %v331 = vld [vmem:[%s1 + $0x74] sm:$0xf]
        %v332 = vld [vmem:[%s1 + $0x78] sm:$0xff]
        %v333 = vld [vmem:[%s1 + $0x80] sm:$0xff]
        %v334 = vld [vmem:[%s1 + $0x88] sm:$0xf]
        %v335 = vld [vmem:[%s1 + $0x8c] sm:$0xff]
        %v336 = vld [vmem:[%s1 + $0x94] sm:$0xff]
        %v337 = vld [vmem:[%s1 + $0x9c] sm:$0xf]
        %v338 = vld [vmem:[%s1 + $0xa0] sm:$0xff]
        %v339 = vld [vmem:[%s1 + $0xa8] sm:$0xff]
        %v340 = vld [vmem:[%s1 + $0xb0] sm:$0xf]
        %v341 = vld [vmem:[%s1 + $0xb4] sm:$0xff]
        %v342 = vld [vmem:[%s1 + $0xbc] sm:$0xff]
        %v343 = vld [vmem:[%s1 + $0xc4] sm:$0xf]
        %v344 = vld [vmem:[%s1 + $0xc8] sm:$0xff]
        %v345 = vld [vmem:[%s1 + $0xd0] sm:$0xff]
        %v346 = vld [vmem:[%s1 + $0xd8] sm:$0xf]
        %v347 = vld [vmem:[%s1 + $0xdc] sm:$0xff]
        %v348 = vld [vmem:[%s1 + $0xe4] sm:$0xff]
        %v349 = vld [vmem:[%s1 + $0xec] sm:$0xf]
        %v350 = vld [vmem:[%s1 + $0xf0] sm:$0xff]
        %v351 = vld [vmem:[%s1 + $0xf8] sm:$0xff]
        %v352 = vld [vmem:[%s1 + $0x100] sm:$0xf]
        %v353 = vld [vmem:[%s1 + $0x104] sm:$0xff]
        %v354 = vld [vmem:[%s1 + $0x10c] sm:$0xff]
        %v355 = vld [vmem:[%s1 + $0x114] sm:$0xf]
        %v356 = vld [vmem:[%s1 + $0x118] sm:$0xff]
        %v357 = vld [vmem:[%s1 + $0x120] sm:$0xff]
        %v358 = vld [vmem:[%s1 + $0x128] sm:$0xf]
        %v359 = vld [vmem:[%s1 + $0x12c] sm:$0xff]
        %v360 = vld [vmem:[%s1 + $0x134] sm:$0xff]
        %v361 = vld [vmem:[%s1 + $0x13c] sm:$0xf]
        %v362 = vld [vmem:[%s2] sm:$0x1f]
        %v364 = vlaneseq
        %v365 = vshrl.u32 %v364, 7
        %v366 = vsub.s32 0, %v365
        %v367 = vrot.slane %v362, %v366
        %v368 = vlaneseq
        %v369 = vshrl.u32 %v368, 7
        %v370 = vsub.s32 1, %v369
        %v371 = vrot.slane %v362, %v370
        %v372 = vlaneseq
        %v373 = vshrl.u32 %v372, 7
        %v374 = vsub.s32 2, %v373
        %v375 = vrot.slane %v362, %v374
        %v376 = vlaneseq
        %v377 = vshrl.u32 %v376, 7
        %v378 = vsub.s32 3, %v377
        %v379 = vrot.slane %v362, %v378
        %v380 = vlaneseq
        %v381 = vshrl.u32 %v380, 7
        %v382 = vsub.s32 4, %v381
        %v383 = vrot.slane %v362, %v382
        %v405 = vunpack.c.l.b16 %v298
        %v406 = vunpack.c.l.b16 %v299
        %v407 = vunpack.c.l.b16 %v300
        %v408 = vunpack.c.l.b16 %v301
        %v409 = vunpack.c.l.b16 %v302
        %v410 = vunpack.c.l.b16 %v303
        %v411 = vunpack.c.l.b16 %v304
        %v412 = vunpack.c.l.b16 %v305
        %v413 = vunpack.c.l.b16 %v306
        %v414 = vunpack.c.l.b16 %v307
        %v415 = vunpack.c.l.b16 %v308
        %v416 = vunpack.c.l.b16 %v309
        %v417 = vunpack.c.l.b16 %v310
        %v418 = vunpack.c.l.b16 %v311
        %v419 = vunpack.c.l.b16 %v312
        %v420 = vunpack.c.l.b16 %v313
        %v421 = vpack.c.b16 %v406, %v405
        %v422 = vpack.c.b16 %v408, %v407
        %v423 = vpack.c.b16 %v410, %v409
        %v424 = vpack.c.b16 %v412, %v411
        %v425 = vpack.c.b16 %v414, %v413
        %v426 = vpack.c.b16 %v416, %v415
        %v427 = vpack.c.b16 %v418, %v417
        %v428 = vpack.c.b16 %v420, %v419
        %v485 = vunpack.c.l.b16 %v314
        %v486 = vunpack.c.h.b16 %v314
        %v487 = vunpack.c.l.b16 %v315
        %v488 = vunpack.c.h.b16 %v315
        %v489 = vunpack.c.l.b16 %v316
        %v490 = vunpack.c.l.b16 %v317
        %v491 = vunpack.c.h.b16 %v317
        %v492 = vunpack.c.l.b16 %v318
        %v493 = vunpack.c.h.b16 %v318
        %v494 = vunpack.c.l.b16 %v319
        %v495 = vunpack.c.l.b16 %v320
        %v496 = vunpack.c.h.b16 %v320
        %v497 = vunpack.c.l.b16 %v321
        %v498 = vunpack.c.h.b16 %v321
        %v499 = vunpack.c.l.b16 %v322
        %v500 = vunpack.c.l.b16 %v323
        %v501 = vunpack.c.h.b16 %v323
        %v502 = vunpack.c.l.b16 %v324
        %v503 = vunpack.c.h.b16 %v324
        %v504 = vunpack.c.l.b16 %v325
        %v505 = vunpack.c.l.b16 %v326
        %v506 = vunpack.c.h.b16 %v326
        %v507 = vunpack.c.l.b16 %v327
        %v508 = vunpack.c.h.b16 %v327
        %v509 = vunpack.c.l.b16 %v328
        %v510 = vunpack.c.l.b16 %v329
        %v511 = vunpack.c.h.b16 %v329
        %v512 = vunpack.c.l.b16 %v330
        %v513 = vunpack.c.h.b16 %v330
        %v514 = vunpack.c.l.b16 %v331
        %v515 = vunpack.c.l.b16 %v332
        %v516 = vunpack.c.h.b16 %v332
        %v517 = vunpack.c.l.b16 %v333
        %v518 = vunpack.c.h.b16 %v333
        %v519 = vunpack.c.l.b16 %v334
        %v520 = vunpack.c.l.b16 %v335
        %v521 = vunpack.c.h.b16 %v335
        %v522 = vunpack.c.l.b16 %v336
        %v523 = vunpack.c.h.b16 %v336
        %v524 = vunpack.c.l.b16 %v337
        %v525 = vunpack.c.l.b16 %v338
        %v526 = vunpack.c.h.b16 %v338
        %v527 = vunpack.c.l.b16 %v339
        %v528 = vunpack.c.h.b16 %v339
        %v529 = vunpack.c.l.b16 %v340
        %v530 = vunpack.c.l.b16 %v341
        %v531 = vunpack.c.h.b16 %v341
        %v532 = vunpack.c.l.b16 %v342
        %v533 = vunpack.c.h.b16 %v342
        %v534 = vunpack.c.l.b16 %v343
        %v535 = vunpack.c.l.b16 %v344
        %v536 = vunpack.c.h.b16 %v344
        %v537 = vunpack.c.l.b16 %v345
        %v538 = vunpack.c.h.b16 %v345
        %v539 = vunpack.c.l.b16 %v346
        %v540 = vunpack.c.l.b16 %v347
        %v541 = vunpack.c.h.b16 %v347
        %v542 = vunpack.c.l.b16 %v348
        %v543 = vunpack.c.h.b16 %v348
        %v544 = vunpack.c.l.b16 %v349
        %v545 = vunpack.c.l.b16 %v350
        %v546 = vunpack.c.h.b16 %v350
        %v547 = vunpack.c.l.b16 %v351
        %v548 = vunpack.c.h.b16 %v351
        %v549 = vunpack.c.l.b16 %v352
        %v550 = vunpack.c.l.b16 %v353
        %v551 = vunpack.c.h.b16 %v353
        %v552 = vunpack.c.l.b16 %v354
        %v553 = vunpack.c.h.b16 %v354
        %v554 = vunpack.c.l.b16 %v355
        %v555 = vunpack.c.l.b16 %v356
        %v556 = vunpack.c.h.b16 %v356
        %v557 = vunpack.c.l.b16 %v357
        %v558 = vunpack.c.h.b16 %v357
        %v559 = vunpack.c.l.b16 %v358
        %v560 = vunpack.c.l.b16 %v359
        %v561 = vunpack.c.h.b16 %v359
        %v562 = vunpack.c.l.b16 %v360
        %v563 = vunpack.c.h.b16 %v360
        %v564 = vunpack.c.l.b16 %v361
        %v565 = vpack.c.b16 %v490, %v485
        %v566 = vpack.c.b16 %v491, %v486
        %v567 = vpack.c.b16 %v492, %v487
        %v568 = vpack.c.b16 %v493, %v488
        %v569 = vpack.c.b16 %v494, %v489
        %v570 = vpack.c.b16 %v500, %v495
        %v571 = vpack.c.b16 %v501, %v496
        %v572 = vpack.c.b16 %v502, %v497
        %v573 = vpack.c.b16 %v503, %v498
        %v574 = vpack.c.b16 %v504, %v499
        %v575 = vpack.c.b16 %v510, %v505
        %v576 = vpack.c.b16 %v511, %v506
        %v577 = vpack.c.b16 %v512, %v507
        %v578 = vpack.c.b16 %v513, %v508
        %v579 = vpack.c.b16 %v514, %v509
        %v580 = vpack.c.b16 %v520, %v515
        %v581 = vpack.c.b16 %v521, %v516
        %v582 = vpack.c.b16 %v522, %v517
        %v583 = vpack.c.b16 %v523, %v518
        %v584 = vpack.c.b16 %v524, %v519
        %v585 = vpack.c.b16 %v530, %v525
        %v586 = vpack.c.b16 %v531, %v526
        %v587 = vpack.c.b16 %v532, %v527
        %v588 = vpack.c.b16 %v533, %v528
        %v589 = vpack.c.b16 %v534, %v529
        %v590 = vpack.c.b16 %v540, %v535
        %v591 = vpack.c.b16 %v541, %v536
        %v592 = vpack.c.b16 %v542, %v537
        %v593 = vpack.c.b16 %v543, %v538
        %v594 = vpack.c.b16 %v544, %v539
        %v595 = vpack.c.b16 %v550, %v545
        %v596 = vpack.c.b16 %v551, %v546
        %v597 = vpack.c.b16 %v552, %v547
        %v598 = vpack.c.b16 %v553, %v548
        %v599 = vpack.c.b16 %v554, %v549
        %v600 = vpack.c.b16 %v560, %v555
        %v601 = vpack.c.b16 %v561, %v556
        %v602 = vpack.c.b16 %v562, %v557
        %v603 = vpack.c.b16 %v563, %v558
        %v604 = vpack.c.b16 %v564, %v559
        %645 = vmatprep.subr.bf16.mxu0 %v566
        %646 = vmatpush1.bf16.msra.mxu0 %v565
        %647 = vmatprep.subr.bf16.mxu0 %v571
        %648 = vmatpush1.bf16.msra.mxu0 %v570
        %649 = vmatprep.subr.bf16.mxu0 %v576
        %650 = vmatpush1.bf16.msra.mxu0 %v575
        %651 = vmatprep.subr.bf16.mxu0 %v581
        %652 = vmatpush1.bf16.msra.mxu0 %v580
        %653 = vmatprep.subr.bf16.mxu0 %v586
        %654 = vmatpush1.bf16.msra.mxu0 %v585
        %655 = vmatprep.subr.bf16.mxu0 %v591
        %656 = vmatpush1.bf16.msra.mxu0 %v590
        %657 = vmatprep.subr.bf16.mxu0 %v596
        %658 = vmatpush1.bf16.msra.mxu0 %v595
        %659 = vmatprep.subr.bf16.mxu0 %v601
        %660 = vmatpush1.bf16.msra.mxu0 %v600
        %661 = vmatprep.subr.bf16.mxu0 0
        %662 = vmatpush1.bf16.msra.mxu0 0
        %663 = vmatprep.subr.bf16.mxu0 0
        %664 = vmatpush1.bf16.msra.mxu0 0
        %665 = vmatprep.subr.bf16.mxu0 0
        %666 = vmatpush1.bf16.msra.mxu0 0
        %667 = vmatprep.subr.bf16.mxu0 0
        %668 = vmatpush1.bf16.msra.mxu0 0
        %669 = vmatprep.subr.bf16.mxu0 0
        %670 = vmatpush1.bf16.msra.mxu0 0
        %671 = vmatprep.subr.bf16.mxu0 0
        %672 = vmatpush1.bf16.msra.mxu0 0
        %673 = vmatprep.subr.bf16.mxu0 0
        %674 = vmatpush1.bf16.msra.mxu0 0
        %675 = vmatprep.subr.bf16.mxu0 0
        %676 = vmatpush1.bf16.msra.mxu0 0
        %677 = vmatprep.mubr.bf16.mxu0 0
        %678 = vmatmul.mubr.bf16.gmra.mrb[0].mxu0 %v421
        %v679 = vpop.f32.mrb[0].mxu0
        %v680 = vadd.f32 %v367, %v679
        %v681 = vpop.f32.mrb[0].mxu0
        %v682 = vadd.f32 %v371, %v681
        %v683 = vpop.f32.mrb[0].mxu0
        %v684 = vadd.f32 %v367, %v683
        %v685 = vpop.f32.mrb[0].mxu0
        %v686 = vadd.f32 %v371, %v685
        %687 = vmatprep.mubr.bf16.mxu0 0
        %688 = vmatmul.mubr.bf16.gmra.mrb[0].mxu0 %v422
        %v689 = vpop.f32.mrb[0].mxu0
        %v690 = vadd.f32 %v367, %v689
        %v691 = vpop.f32.mrb[0].mxu0
        %v692 = vadd.f32 %v371, %v691
        %v693 = vpop.f32.mrb[0].mxu0
        %v694 = vadd.f32 %v367, %v693
        %v695 = vpop.f32.mrb[0].mxu0
        %v696 = vadd.f32 %v371, %v695
        %697 = vmatprep.mubr.bf16.mxu0 0
        %698 = vmatmul.mubr.bf16.gmra.mrb[0].mxu0 %v423
        %v699 = vpop.f32.mrb[0].mxu0
        %v700 = vadd.f32 %v367, %v699
        %v701 = vpop.f32.mrb[0].mxu0
        %v702 = vadd.f32 %v371, %v701
        %v703 = vpop.f32.mrb[0].mxu0
        %v704 = vadd.f32 %v367, %v703
        %v705 = vpop.f32.mrb[0].mxu0
        %v706 = vadd.f32 %v371, %v705
        %707 = vmatprep.mubr.bf16.mxu0 0
        %708 = vmatmul.mubr.bf16.gmra.mrb[0].mxu0 %v424
        %v709 = vpop.f32.mrb[0].mxu0
        %v710 = vadd.f32 %v367, %v709
        %v711 = vpop.f32.mrb[0].mxu0
        %v712 = vadd.f32 %v371, %v711
        %v713 = vpop.f32.mrb[0].mxu0
        %v714 = vadd.f32 %v367, %v713
        %v715 = vpop.f32.mrb[0].mxu0
        %v716 = vadd.f32 %v371, %v715
        %717 = vmatprep.mubr.bf16.mxu0 0
        %718 = vmatmul.mubr.bf16.gmra.mrb[0].mxu0 %v425
        %v719 = vpop.f32.mrb[0].mxu0
        %v720 = vadd.f32 %v367, %v719
        %v721 = vpop.f32.mrb[0].mxu0
        %v722 = vadd.f32 %v371, %v721
        %v723 = vpop.f32.mrb[0].mxu0
        %v724 = vadd.f32 %v367, %v723
        %v725 = vpop.f32.mrb[0].mxu0
        %v726 = vadd.f32 %v371, %v725
        %727 = vmatprep.mubr.bf16.mxu0 0
        %728 = vmatmul.mubr.bf16.gmra.mrb[0].mxu0 %v426
        %v729 = vpop.f32.mrb[0].mxu0
        %v730 = vadd.f32 %v367, %v729
        %v731 = vpop.f32.mrb[0].mxu0
        %v732 = vadd.f32 %v371, %v731
        %v733 = vpop.f32.mrb[0].mxu0
        %v734 = vadd.f32 %v367, %v733
        %v735 = vpop.f32.mrb[0].mxu0
        %v736 = vadd.f32 %v371, %v735
        %737 = vmatprep.mubr.bf16.mxu0 0
        %738 = vmatmul.mubr.bf16.gmra.mrb[0].mxu0 %v427
        %v739 = vpop.f32.mrb[0].mxu0
        %v740 = vadd.f32 %v367, %v739
        %v741 = vpop.f32.mrb[0].mxu0
        %v742 = vadd.f32 %v371, %v741
        %v743 = vpop.f32.mrb[0].mxu0
        %v744 = vadd.f32 %v367, %v743
        %v745 = vpop.f32.mrb[0].mxu0
        %v746 = vadd.f32 %v371, %v745
        %747 = vmatprep.mubr.bf16.mxu0 0
        %748 = vmatmul.mubr.bf16.gmra.mrb[0].mxu0 %v428
        %v749 = vpop.f32.mrb[0].mxu0
        %v750 = vadd.f32 %v367, %v749
        %v751 = vpop.f32.mrb[0].mxu0
        %v752 = vadd.f32 %v371, %v751
        %v753 = vpop.f32.mrb[0].mxu0
        %v754 = vadd.f32 %v367, %v753
        %v755 = vpop.f32.mrb[0].mxu0
        %v756 = vadd.f32 %v371, %v755
        %757 = vdwg.mxu0
        %758 = vmatprep.subr.bf16.mxu0 %v568
        %759 = vmatpush1.bf16.msra.mxu0 %v567
        %760 = vmatprep.subr.bf16.mxu0 %v573
        %761 = vmatpush1.bf16.msra.mxu0 %v572
        %762 = vmatprep.subr.bf16.mxu0 %v578
        %763 = vmatpush1.bf16.msra.mxu0 %v577
        %764 = vmatprep.subr.bf16.mxu0 %v583
        %765 = vmatpush1.bf16.msra.mxu0 %v582
        %766 = vmatprep.subr.bf16.mxu0 %v588
        %767 = vmatpush1.bf16.msra.mxu0 %v587
        %768 = vmatprep.subr.bf16.mxu0 %v593
        %769 = vmatpush1.bf16.msra.mxu0 %v592
        %770 = vmatprep.subr.bf16.mxu0 %v598
        %771 = vmatpush1.bf16.msra.mxu0 %v597
        %772 = vmatprep.subr.bf16.mxu0 %v603
        %773 = vmatpush1.bf16.msra.mxu0 %v602
        %774 = vmatprep.subr.bf16.mxu0 0
        %775 = vmatpush1.bf16.msra.mxu0 0
        %776 = vmatprep.subr.bf16.mxu0 0
        %777 = vmatpush1.bf16.msra.mxu0 0
        %778 = vmatprep.subr.bf16.mxu0 0
        %779 = vmatpush1.bf16.msra.mxu0 0
        %780 = vmatprep.subr.bf16.mxu0 0
        %781 = vmatpush1.bf16.msra.mxu0 0
        %782 = vmatprep.subr.bf16.mxu0 0
        %783 = vmatpush1.bf16.msra.mxu0 0
        %784 = vmatprep.subr.bf16.mxu0 0
        %785 = vmatpush1.bf16.msra.mxu0 0
        %786 = vmatprep.subr.bf16.mxu0 0
        %787 = vmatpush1.bf16.msra.mxu0 0
        %788 = vmatprep.subr.bf16.mxu0 0
        %789 = vmatpush1.bf16.msra.mxu0 0
        %790 = vmatprep.mubr.bf16.mxu0 0
        %791 = vmatmul.mubr.bf16.gmra.mrb[0].mxu0 %v421
        %v792 = vpop.f32.mrb[0].mxu0
        %v793 = vadd.f32 %v375, %v792
        %v794 = vpop.f32.mrb[0].mxu0
        %v795 = vadd.f32 %v379, %v794
        %v796 = vpop.f32.mrb[0].mxu0
        %v797 = vadd.f32 %v375, %v796
        %v798 = vpop.f32.mrb[0].mxu0
        %v799 = vadd.f32 %v379, %v798
        %800 = vmatprep.mubr.bf16.mxu0 0
        %801 = vmatmul.mubr.bf16.gmra.mrb[0].mxu0 %v422
        %v802 = vpop.f32.mrb[0].mxu0
        %v803 = vadd.f32 %v375, %v802
        %v804 = vpop.f32.mrb[0].mxu0
        %v805 = vadd.f32 %v379, %v804
        %v806 = vpop.f32.mrb[0].mxu0
        %v807 = vadd.f32 %v375, %v806
        %v808 = vpop.f32.mrb[0].mxu0
        %v809 = vadd.f32 %v379, %v808
        %810 = vmatprep.mubr.bf16.mxu0 0
        %811 = vmatmul.mubr.bf16.gmra.mrb[0].mxu0 %v423
        %v812 = vpop.f32.mrb[0].mxu0
        %v813 = vadd.f32 %v375, %v812
        %v814 = vpop.f32.mrb[0].mxu0
        %v815 = vadd.f32 %v379, %v814
        %v816 = vpop.f32.mrb[0].mxu0
        %v817 = vadd.f32 %v375, %v816
        %v818 = vpop.f32.mrb[0].mxu0
        %v819 = vadd.f32 %v379, %v818
        %820 = vmatprep.mubr.bf16.mxu0 0
        %821 = vmatmul.mubr.bf16.gmra.mrb[0].mxu0 %v424
        %v822 = vpop.f32.mrb[0].mxu0
        %v823 = vadd.f32 %v375, %v822
        %v824 = vpop.f32.mrb[0].mxu0
        %v825 = vadd.f32 %v379, %v824
        %v826 = vpop.f32.mrb[0].mxu0
        %v827 = vadd.f32 %v375, %v826
        %v828 = vpop.f32.mrb[0].mxu0
        %v829 = vadd.f32 %v379, %v828
        %830 = vmatprep.mubr.bf16.mxu0 0
        %831 = vmatmul.mubr.bf16.gmra.mrb[0].mxu0 %v425
        %v832 = vpop.f32.mrb[0].mxu0
        %v833 = vadd.f32 %v375, %v832
        %v834 = vpop.f32.mrb[0].mxu0
        %v835 = vadd.f32 %v379, %v834
        %v836 = vpop.f32.mrb[0].mxu0
        %v837 = vadd.f32 %v375, %v836
        %v838 = vpop.f32.mrb[0].mxu0
        %v839 = vadd.f32 %v379, %v838
        %840 = vmatprep.mubr.bf16.mxu0 0
        %841 = vmatmul.mubr.bf16.gmra.mrb[0].mxu0 %v426
        %v842 = vpop.f32.mrb[0].mxu0
        %v843 = vadd.f32 %v375, %v842
        %v844 = vpop.f32.mrb[0].mxu0
        %v845 = vadd.f32 %v379, %v844
        %v846 = vpop.f32.mrb[0].mxu0
        %v847 = vadd.f32 %v375, %v846
        %v848 = vpop.f32.mrb[0].mxu0
        %v849 = vadd.f32 %v379, %v848
        %850 = vmatprep.mubr.bf16.mxu0 0
        %851 = vmatmul.mubr.bf16.gmra.mrb[0].mxu0 %v427
        %v852 = vpop.f32.mrb[0].mxu0
        %v853 = vadd.f32 %v375, %v852
        %v854 = vpop.f32.mrb[0].mxu0
        %v855 = vadd.f32 %v379, %v854
        %v856 = vpop.f32.mrb[0].mxu0
        %v857 = vadd.f32 %v375, %v856
        %v858 = vpop.f32.mrb[0].mxu0
        %v859 = vadd.f32 %v379, %v858
        %860 = vmatprep.mubr.bf16.mxu0 0
        %861 = vmatmul.mubr.bf16.gmra.mrb[0].mxu0 %v428
        %v862 = vpop.f32.mrb[0].mxu0
        %v863 = vadd.f32 %v375, %v862
        %v864 = vpop.f32.mrb[0].mxu0
        %v865 = vadd.f32 %v379, %v864
        %v866 = vpop.f32.mrb[0].mxu0
        %v867 = vadd.f32 %v375, %v866
        %v868 = vpop.f32.mrb[0].mxu0
        %v869 = vadd.f32 %v379, %v868
        %870 = vdwg.mxu0
        %871 = vmatprep.subr.bf16.mxu0 0
        %872 = vmatpush1.bf16.msra.mxu0 %v569
        %873 = vmatprep.subr.bf16.mxu0 0
        %874 = vmatpush1.bf16.msra.mxu0 %v574
        %875 = vmatprep.subr.bf16.mxu0 0
        %876 = vmatpush1.bf16.msra.mxu0 %v579
        %877 = vmatprep.subr.bf16.mxu0 0
        %878 = vmatpush1.bf16.msra.mxu0 %v584
        %879 = vmatprep.subr.bf16.mxu0 0
        %880 = vmatpush1.bf16.msra.mxu0 %v589
        %881 = vmatprep.subr.bf16.mxu0 0
        %882 = vmatpush1.bf16.msra.mxu0 %v594
        %883 = vmatprep.subr.bf16.mxu0 0
        %884 = vmatpush1.bf16.msra.mxu0 %v599
        %885 = vmatprep.subr.bf16.mxu0 0
        %886 = vmatpush1.bf16.msra.mxu0 %v604
        %887 = vmatprep.subr.bf16.mxu0 0
        %888 = vmatpush1.bf16.msra.mxu0 0
        %889 = vmatprep.subr.bf16.mxu0 0
        %890 = vmatpush1.bf16.msra.mxu0 0
        %891 = vmatprep.subr.bf16.mxu0 0
        %892 = vmatpush1.bf16.msra.mxu0 0
        %893 = vmatprep.subr.bf16.mxu0 0
        %894 = vmatpush1.bf16.msra.mxu0 0
        %895 = vmatprep.subr.bf16.mxu0 0
        %896 = vmatpush1.bf16.msra.mxu0 0
        %897 = vmatprep.subr.bf16.mxu0 0
        %898 = vmatpush1.bf16.msra.mxu0 0
        %899 = vmatprep.subr.bf16.mxu0 0
        %900 = vmatpush1.bf16.msra.mxu0 0
        %901 = vmatprep.subr.bf16.mxu0 0
        %902 = vmatpush1.bf16.msra.mxu0 0
        %903 = vmatprep.mubr.bf16.mxu0 0
        %904 = vmatmul.mubr.bf16.gmra.mrb[0].mxu0 %v421
        %v905 = vpop.f32.mrb[0].mxu0
        %v906 = vadd.f32 %v383, %v905
        %v907 = vpop.f32.mrb[0].mxu0
        %v908 = vpop.f32.mrb[0].mxu0
        %v909 = vadd.f32 %v383, %v908
        %v910 = vpop.f32.mrb[0].mxu0
        %911 = vmatprep.mubr.bf16.mxu0 0
        %912 = vmatmul.mubr.bf16.gmra.mrb[0].mxu0 %v422
        %v913 = vpop.f32.mrb[0].mxu0
        %v914 = vadd.f32 %v383, %v913
        %v915 = vpop.f32.mrb[0].mxu0
        %v916 = vpop.f32.mrb[0].mxu0
        %v917 = vadd.f32 %v383, %v916
        %v918 = vpop.f32.mrb[0].mxu0
        %919 = vmatprep.mubr.bf16.mxu0 0
        %920 = vmatmul.mubr.bf16.gmra.mrb[0].mxu0 %v423
        %v921 = vpop.f32.mrb[0].mxu0
        %v922 = vadd.f32 %v383, %v921
        %v923 = vpop.f32.mrb[0].mxu0
        %v924 = vpop.f32.mrb[0].mxu0
        %v925 = vadd.f32 %v383, %v924
        %v926 = vpop.f32.mrb[0].mxu0
        %927 = vmatprep.mubr.bf16.mxu0 0
        %928 = vmatmul.mubr.bf16.gmra.mrb[0].mxu0 %v424
        %v929 = vpop.f32.mrb[0].mxu0
        %v930 = vadd.f32 %v383, %v929
        %v931 = vpop.f32.mrb[0].mxu0
        %v932 = vpop.f32.mrb[0].mxu0
        %v933 = vadd.f32 %v383, %v932
        %v934 = vpop.f32.mrb[0].mxu0
        %935 = vmatprep.mubr.bf16.mxu0 0
        %936 = vmatmul.mubr.bf16.gmra.mrb[0].mxu0 %v425
        %v937 = vpop.f32.mrb[0].mxu0
        %v938 = vadd.f32 %v383, %v937
        %v939 = vpop.f32.mrb[0].mxu0
        %v940 = vpop.f32.mrb[0].mxu0
        %v941 = vadd.f32 %v383, %v940
        %v942 = vpop.f32.mrb[0].mxu0
        %943 = vmatprep.mubr.bf16.mxu0 0
        %944 = vmatmul.mubr.bf16.gmra.mrb[0].mxu0 %v426
        %v945 = vpop.f32.mrb[0].mxu0
        %v946 = vadd.f32 %v383, %v945
        %v947 = vpop.f32.mrb[0].mxu0
        %v948 = vpop.f32.mrb[0].mxu0
        %v949 = vadd.f32 %v383, %v948
        %v950 = vpop.f32.mrb[0].mxu0
        %951 = vmatprep.mubr.bf16.mxu0 0
        %952 = vmatmul.mubr.bf16.gmra.mrb[0].mxu0 %v427
        %v953 = vpop.f32.mrb[0].mxu0
        %v954 = vadd.f32 %v383, %v953
        %v955 = vpop.f32.mrb[0].mxu0
        %v956 = vpop.f32.mrb[0].mxu0
        %v957 = vadd.f32 %v383, %v956
        %v958 = vpop.f32.mrb[0].mxu0
        %959 = vmatprep.mubr.bf16.mxu0 0
        %960 = vmatmul.mubr.bf16.gmra.mrb[0].mxu0 %v428
        %v961 = vpop.f32.mrb[0].mxu0
        %v962 = vadd.f32 %v383, %v961
        %v963 = vpop.f32.mrb[0].mxu0
        %v964 = vpop.f32.mrb[0].mxu0
        %v965 = vadd.f32 %v383, %v964
        %v966 = vpop.f32.mrb[0].mxu0
        %967 = vdwg.mxu0
        %v968 = vmax.f32 %v680, 0.0
        %v969 = vmax.f32 %v682, 0.0
        %v970 = vmax.f32 %v793, 0.0
        %v971 = vmax.f32 %v795, 0.0
        %v972 = vmax.f32 %v906, 0.0
        %v973 = vmax.f32 %v684, 0.0
        %v974 = vmax.f32 %v686, 0.0
        %v975 = vmax.f32 %v797, 0.0
        %v976 = vmax.f32 %v799, 0.0
        %v977 = vmax.f32 %v909, 0.0
        %v978 = vmax.f32 %v690, 0.0
        %v979 = vmax.f32 %v692, 0.0
        %v980 = vmax.f32 %v803, 0.0
        %v981 = vmax.f32 %v805, 0.0
        %v982 = vmax.f32 %v914, 0.0
        %v983 = vmax.f32 %v694, 0.0
        %v984 = vmax.f32 %v696, 0.0
        %v985 = vmax.f32 %v807, 0.0
        %v986 = vmax.f32 %v809, 0.0
        %v987 = vmax.f32 %v917, 0.0
        %v988 = vmax.f32 %v700, 0.0
        %v989 = vmax.f32 %v702, 0.0
        %v990 = vmax.f32 %v813, 0.0
        %v991 = vmax.f32 %v815, 0.0
        %v992 = vmax.f32 %v922, 0.0
        %v993 = vmax.f32 %v704, 0.0
        %v994 = vmax.f32 %v706, 0.0
        %v995 = vmax.f32 %v817, 0.0
        %v996 = vmax.f32 %v819, 0.0
        %v997 = vmax.f32 %v925, 0.0
        %v998 = vmax.f32 %v710, 0.0
        %v999 = vmax.f32 %v712, 0.0
        %v1000 = vmax.f32 %v823, 0.0
        %v1001 = vmax.f32 %v825, 0.0
        %v1002 = vmax.f32 %v930, 0.0
        %v1003 = vmax.f32 %v714, 0.0
        %v1004 = vmax.f32 %v716, 0.0
        %v1005 = vmax.f32 %v827, 0.0
        %v1006 = vmax.f32 %v829, 0.0
        %v1007 = vmax.f32 %v933, 0.0
        %v1008 = vmax.f32 %v720, 0.0
        %v1009 = vmax.f32 %v722, 0.0
        %v1010 = vmax.f32 %v833, 0.0
        %v1011 = vmax.f32 %v835, 0.0
        %v1012 = vmax.f32 %v938, 0.0
        %v1013 = vmax.f32 %v724, 0.0
        %v1014 = vmax.f32 %v726, 0.0
        %v1015 = vmax.f32 %v837, 0.0
        %v1016 = vmax.f32 %v839, 0.0
        %v1017 = vmax.f32 %v941, 0.0
        %v1018 = vmax.f32 %v730, 0.0
        %v1019 = vmax.f32 %v732, 0.0
        %v1020 = vmax.f32 %v843, 0.0
        %v1021 = vmax.f32 %v845, 0.0
        %v1022 = vmax.f32 %v946, 0.0
        %v1023 = vmax.f32 %v734, 0.0
        %v1024 = vmax.f32 %v736, 0.0
        %v1025 = vmax.f32 %v847, 0.0
        %v1026 = vmax.f32 %v849, 0.0
        %v1027 = vmax.f32 %v949, 0.0
        %v1028 = vmax.f32 %v740, 0.0
        %v1029 = vmax.f32 %v742, 0.0
        %v1030 = vmax.f32 %v853, 0.0
        %v1031 = vmax.f32 %v855, 0.0
        %v1032 = vmax.f32 %v954, 0.0
        %v1033 = vmax.f32 %v744, 0.0
        %v1034 = vmax.f32 %v746, 0.0
        %v1035 = vmax.f32 %v857, 0.0
        %v1036 = vmax.f32 %v859, 0.0
        %v1037 = vmax.f32 %v957, 0.0
        %v1038 = vmax.f32 %v750, 0.0
        %v1039 = vmax.f32 %v752, 0.0
        %v1040 = vmax.f32 %v863, 0.0
        %v1041 = vmax.f32 %v865, 0.0
        %v1042 = vmax.f32 %v962, 0.0
        %v1043 = vmax.f32 %v754, 0.0
        %v1044 = vmax.f32 %v756, 0.0
        %v1045 = vmax.f32 %v867, 0.0
        %v1046 = vmax.f32 %v869, 0.0
        %v1047 = vmax.f32 %v965, 0.0
        %v1048 = vpack.c.bf16 %v973, %v968
        %v1049 = vpack.c.bf16 %v974, %v969
        %v1050 = vpack.c.bf16 %v975, %v970
        %v1051 = vpack.c.bf16 %v976, %v971
        %v1052 = vpack.c.bf16 %v977, %v972
        %v1053 = vpack.c.bf16 %v983, %v978
        %v1054 = vpack.c.bf16 %v984, %v979
        %v1055 = vpack.c.bf16 %v985, %v980
        %v1056 = vpack.c.bf16 %v986, %v981
        %v1057 = vpack.c.bf16 %v987, %v982
        %v1058 = vpack.c.bf16 %v993, %v988
        %v1059 = vpack.c.bf16 %v994, %v989
        %v1060 = vpack.c.bf16 %v995, %v990
        %v1061 = vpack.c.bf16 %v996, %v991
        %v1062 = vpack.c.bf16 %v997, %v992
        %v1063 = vpack.c.bf16 %v1003, %v998
        %v1064 = vpack.c.bf16 %v1004, %v999
        %v1065 = vpack.c.bf16 %v1005, %v1000
        %v1066 = vpack.c.bf16 %v1006, %v1001
        %v1067 = vpack.c.bf16 %v1007, %v1002
        %v1068 = vpack.c.bf16 %v1013, %v1008
        %v1069 = vpack.c.bf16 %v1014, %v1009
        %v1070 = vpack.c.bf16 %v1015, %v1010
        %v1071 = vpack.c.bf16 %v1016, %v1011
        %v1072 = vpack.c.bf16 %v1017, %v1012
        %v1073 = vpack.c.bf16 %v1023, %v1018
        %v1074 = vpack.c.bf16 %v1024, %v1019
        %v1075 = vpack.c.bf16 %v1025, %v1020
        %v1076 = vpack.c.bf16 %v1026, %v1021
        %v1077 = vpack.c.bf16 %v1027, %v1022
        %v1078 = vpack.c.bf16 %v1033, %v1028
        %v1079 = vpack.c.bf16 %v1034, %v1029
        %v1080 = vpack.c.bf16 %v1035, %v1030
        %v1081 = vpack.c.bf16 %v1036, %v1031
        %v1082 = vpack.c.bf16 %v1037, %v1032
        %v1083 = vpack.c.bf16 %v1043, %v1038
        %v1084 = vpack.c.bf16 %v1044, %v1039
        %v1085 = vpack.c.bf16 %v1045, %v1040
        %v1086 = vpack.c.bf16 %v1046, %v1041
        %v1087 = vpack.c.bf16 %v1047, %v1042
        %v1088 = vld [vmem:[#allocation2] sm:$0xf]
        %v1089 = vld [vmem:[#allocation2 + $0x4] sm:$0xf]
        %v1090 = vld [vmem:[#allocation2 + $0x8] sm:$0xf]
        %v1091 = vld [vmem:[#allocation2 + $0xc] sm:$0xf]
        %v1092 = vld [vmem:[#allocation2 + $0x10] sm:$0xf]
        %v1093 = vld [vmem:[#allocation2 + $0x14] sm:$0xf]
        %v1094 = vld [vmem:[#allocation2 + $0x18] sm:$0xf]
        %v1095 = vld [vmem:[#allocation2 + $0x1c] sm:$0xf]
        %v1096 = vld [vmem:[#allocation2 + $0x20] sm:$0xf]
        %v1097 = vld [vmem:[#allocation2 + $0x24] sm:$0xf]
        %v1098 = vld [vmem:[#allocation2 + $0x28] sm:$0xf]
        %v1099 = vld [vmem:[#allocation2 + $0x2c] sm:$0xf]
        %v1100 = vld [vmem:[#allocation2 + $0x30] sm:$0xf]
        %v1101 = vld [vmem:[#allocation2 + $0x34] sm:$0xf]
        %v1102 = vld [vmem:[#allocation2 + $0x38] sm:$0xf]
        %v1103 = vld [vmem:[#allocation2 + $0x3c] sm:$0xf]
        %v1104 = vld [vmem:[#allocation2 + $0x40] sm:$0xf]
        %v1105 = vld [vmem:[#allocation2 + $0x44] sm:$0xf]
        %v1106 = vld [vmem:[#allocation2 + $0x48] sm:$0xf]
        %v1107 = vld [vmem:[#allocation2 + $0x4c] sm:$0xf]
        %v1108 = vld [vmem:[#allocation2 + $0x50] sm:$0xf]
        %v1109 = vld [vmem:[#allocation2 + $0x54] sm:$0xf]
        %v1110 = vld [vmem:[#allocation2 + $0x58] sm:$0xf]
        %v1111 = vld [vmem:[#allocation2 + $0x5c] sm:$0xf]
        %v1112 = vld [vmem:[#allocation2 + $0x60] sm:$0xf]
        %v1113 = vld [vmem:[#allocation2 + $0x64] sm:$0xf]
        %v1114 = vld [vmem:[#allocation2 + $0x68] sm:$0xf]
        %v1115 = vld [vmem:[#allocation2 + $0x6c] sm:$0xf]
        %v1116 = vld [vmem:[#allocation2 + $0x70] sm:$0xf]
        %v1117 = vld [vmem:[#allocation2 + $0x74] sm:$0xf]
        %v1118 = vld [vmem:[#allocation2 + $0x78] sm:$0xf]
        %v1119 = vld [vmem:[#allocation2 + $0x7c] sm:$0xf]
        %v1120 = vld [vmem:[#allocation2 + $0x80] sm:$0xf]
        %v1121 = vld [vmem:[#allocation2 + $0x84] sm:$0xf]
        %v1122 = vld [vmem:[#allocation2 + $0x88] sm:$0xf]
        %v1123 = vld [vmem:[#allocation2 + $0x8c] sm:$0xf]
        %v1124 = vld [vmem:[#allocation2 + $0x90] sm:$0xf]
        %v1125 = vld [vmem:[#allocation2 + $0x94] sm:$0xf]
        %v1126 = vld [vmem:[#allocation2 + $0x98] sm:$0xf]
        %v1127 = vld [vmem:[#allocation2 + $0x9c] sm:$0xf]
        %v1128 = vld [vmem:[#allocation2 + $0xa0] sm:$0xf]
        %v1129 = vld [vmem:[#allocation2 + $0xa4] sm:$0xf]
        %v1130 = vld [vmem:[#allocation2 + $0xa8] sm:$0xf]
        %v1131 = vld [vmem:[#allocation2 + $0xac] sm:$0xf]
        %v1132 = vld [vmem:[#allocation2 + $0xb0] sm:$0xf]
        %v1133 = vld [vmem:[#allocation2 + $0xb4] sm:$0xf]
        %v1134 = vld [vmem:[#allocation2 + $0xb8] sm:$0xf]
        %v1135 = vld [vmem:[#allocation2 + $0xbc] sm:$0xf]
        %v1136 = vld [vmem:[#allocation2 + $0xc0] sm:$0xf]
        %v1137 = vld [vmem:[#allocation2 + $0xc4] sm:$0xf]
        %v1138 = vld [vmem:[#allocation2 + $0xc8] sm:$0xf]
        %v1139 = vld [vmem:[#allocation2 + $0xcc] sm:$0xf]
        %v1140 = vld [vmem:[#allocation2 + $0xd0] sm:$0xf]
        %v1141 = vld [vmem:[#allocation2 + $0xd4] sm:$0xf]
        %v1142 = vld [vmem:[#allocation2 + $0xd8] sm:$0xf]
        %v1143 = vld [vmem:[#allocation2 + $0xdc] sm:$0xf]
        %v1144 = vld [vmem:[#allocation2 + $0xe0] sm:$0xf]
        %v1145 = vld [vmem:[#allocation2 + $0xe4] sm:$0xf]
        %v1146 = vld [vmem:[#allocation2 + $0xe8] sm:$0xf]
        %v1147 = vld [vmem:[#allocation2 + $0xec] sm:$0xf]
        %v1148 = vld [vmem:[#allocation2 + $0xf0] sm:$0xf]
        %v1149 = vld [vmem:[#allocation2 + $0xf4] sm:$0xf]
        %v1150 = vld [vmem:[#allocation2 + $0xf8] sm:$0xf]
        %v1151 = vld [vmem:[#allocation2 + $0xfc] sm:$0xf]
        %v1152 = vld [vmem:[#allocation2 + $0x100] sm:$0xf]
        %v1153 = vld [vmem:[#allocation2 + $0x104] sm:$0xf]
        %v1154 = vld [vmem:[#allocation2 + $0x108] sm:$0xf]
        %v1155 = vld [vmem:[#allocation2 + $0x10c] sm:$0xf]
        %v1156 = vld [vmem:[#allocation2 + $0x110] sm:$0xf]
        %v1157 = vld [vmem:[#allocation2 + $0x114] sm:$0xf]
        %v1158 = vld [vmem:[#allocation2 + $0x118] sm:$0xf]
        %v1159 = vld [vmem:[#allocation2 + $0x11c] sm:$0xf]
        %v1160 = vld [vmem:[#allocation2 + $0x120] sm:$0xf]
        %v1161 = vld [vmem:[#allocation2 + $0x124] sm:$0xf]
        %v1162 = vld [vmem:[#allocation2 + $0x128] sm:$0xf]
        %v1163 = vld [vmem:[#allocation2 + $0x12c] sm:$0xf]
        %v1164 = vld [vmem:[#allocation2 + $0x130] sm:$0xf]
        %v1165 = vld [vmem:[#allocation2 + $0x134] sm:$0xf]
        %v1166 = vld [vmem:[#allocation2 + $0x138] sm:$0xf]
        %v1167 = vld [vmem:[#allocation2 + $0x13c] sm:$0xf]
        %v1168 = vld [vmem:[%s4] sm:$0x1]
        %v1170 = vlaneseq
        %v1171 = vshrl.u32 %v1170, 7
        %v1172 = vsub.s32 0, %v1171
        %v1173 = vrot.slane %v1168, %v1172
        %v1255 = vunpack.c.l.b16 %v1088
        %v1256 = vunpack.c.l.b16 %v1089
        %v1257 = vunpack.c.l.b16 %v1090
        %v1258 = vunpack.c.l.b16 %v1091
        %v1259 = vunpack.c.l.b16 %v1092
        %v1260 = vunpack.c.l.b16 %v1093
        %v1261 = vunpack.c.l.b16 %v1094
        %v1262 = vunpack.c.l.b16 %v1095
        %v1263 = vunpack.c.l.b16 %v1096
        %v1264 = vunpack.c.l.b16 %v1097
        %v1265 = vunpack.c.l.b16 %v1098
        %v1266 = vunpack.c.l.b16 %v1099
        %v1267 = vunpack.c.l.b16 %v1100
        %v1268 = vunpack.c.l.b16 %v1101
        %v1269 = vunpack.c.l.b16 %v1102
        %v1270 = vunpack.c.l.b16 %v1103
        %v1271 = vunpack.c.l.b16 %v1104
        %v1272 = vunpack.c.l.b16 %v1105
        %v1273 = vunpack.c.l.b16 %v1106
        %v1274 = vunpack.c.l.b16 %v1107
        %v1275 = vunpack.c.l.b16 %v1108
        %v1276 = vunpack.c.l.b16 %v1109
        %v1277 = vunpack.c.l.b16 %v1110
        %v1278 = vunpack.c.l.b16 %v1111
        %v1279 = vunpack.c.l.b16 %v1112
        %v1280 = vunpack.c.l.b16 %v1113
        %v1281 = vunpack.c.l.b16 %v1114
        %v1282 = vunpack.c.l.b16 %v1115
        %v1283 = vunpack.c.l.b16 %v1116
        %v1284 = vunpack.c.l.b16 %v1117
        %v1285 = vunpack.c.l.b16 %v1118
        %v1286 = vunpack.c.l.b16 %v1119
        %v1287 = vunpack.c.l.b16 %v1120
        %v1288 = vunpack.c.l.b16 %v1121
        %v1289 = vunpack.c.l.b16 %v1122
        %v1290 = vunpack.c.l.b16 %v1123
        %v1291 = vunpack.c.l.b16 %v1124
        %v1292 = vunpack.c.l.b16 %v1125
        %v1293 = vunpack.c.l.b16 %v1126
        %v1294 = vunpack.c.l.b16 %v1127
        %v1295 = vunpack.c.l.b16 %v1128
        %v1296 = vunpack.c.l.b16 %v1129
        %v1297 = vunpack.c.l.b16 %v1130
        %v1298 = vunpack.c.l.b16 %v1131
        %v1299 = vunpack.c.l.b16 %v1132
        %v1300 = vunpack.c.l.b16 %v1133
        %v1301 = vunpack.c.l.b16 %v1134
        %v1302 = vunpack.c.l.b16 %v1135
        %v1303 = vunpack.c.l.b16 %v1136
        %v1304 = vunpack.c.l.b16 %v1137
        %v1305 = vunpack.c.l.b16 %v1138
        %v1306 = vunpack.c.l.b16 %v1139
        %v1307 = vunpack.c.l.b16 %v1140
        %v1308 = vunpack.c.l.b16 %v1141
        %v1309 = vunpack.c.l.b16 %v1142
        %v1310 = vunpack.c.l.b16 %v1143
        %v1311 = vunpack.c.l.b16 %v1144
        %v1312 = vunpack.c.l.b16 %v1145
        %v1313 = vunpack.c.l.b16 %v1146
        %v1314 = vunpack.c.l.b16 %v1147
        %v1315 = vunpack.c.l.b16 %v1148
        %v1316 = vunpack.c.l.b16 %v1149
        %v1317 = vunpack.c.l.b16 %v1150
        %v1318 = vunpack.c.l.b16 %v1151
        %v1319 = vunpack.c.l.b16 %v1152
        %v1320 = vunpack.c.l.b16 %v1153
        %v1321 = vunpack.c.l.b16 %v1154
        %v1322 = vunpack.c.l.b16 %v1155
        %v1323 = vunpack.c.l.b16 %v1156
        %v1324 = vunpack.c.l.b16 %v1157
        %v1325 = vunpack.c.l.b16 %v1158
        %v1326 = vunpack.c.l.b16 %v1159
        %v1327 = vunpack.c.l.b16 %v1160
        %v1328 = vunpack.c.l.b16 %v1161
        %v1329 = vunpack.c.l.b16 %v1162
        %v1330 = vunpack.c.l.b16 %v1163
        %v1331 = vunpack.c.l.b16 %v1164
        %v1332 = vunpack.c.l.b16 %v1165
        %v1333 = vunpack.c.l.b16 %v1166
        %v1334 = vunpack.c.l.b16 %v1167
        %v1335 = vpack.c.b16 %v1256, %v1255
        %v1336 = vpack.c.b16 %v1258, %v1257
        %v1337 = vpack.c.b16 %v1260, %v1259
        %v1338 = vpack.c.b16 %v1262, %v1261
        %v1339 = vpack.c.b16 %v1264, %v1263
        %v1340 = vpack.c.b16 %v1266, %v1265
        %v1341 = vpack.c.b16 %v1268, %v1267
        %v1342 = vpack.c.b16 %v1270, %v1269
        %v1343 = vpack.c.b16 %v1272, %v1271
        %v1344 = vpack.c.b16 %v1274, %v1273
        %v1345 = vpack.c.b16 %v1276, %v1275
        %v1346 = vpack.c.b16 %v1278, %v1277
        %v1347 = vpack.c.b16 %v1280, %v1279
        %v1348 = vpack.c.b16 %v1282, %v1281
        %v1349 = vpack.c.b16 %v1284, %v1283
        %v1350 = vpack.c.b16 %v1286, %v1285
        %v1351 = vpack.c.b16 %v1288, %v1287
        %v1352 = vpack.c.b16 %v1290, %v1289
        %v1353 = vpack.c.b16 %v1292, %v1291
        %v1354 = vpack.c.b16 %v1294, %v1293
        %v1355 = vpack.c.b16 %v1296, %v1295
        %v1356 = vpack.c.b16 %v1298, %v1297
        %v1357 = vpack.c.b16 %v1300, %v1299
        %v1358 = vpack.c.b16 %v1302, %v1301
        %v1359 = vpack.c.b16 %v1304, %v1303
        %v1360 = vpack.c.b16 %v1306, %v1305
        %v1361 = vpack.c.b16 %v1308, %v1307
        %v1362 = vpack.c.b16 %v1310, %v1309
        %v1363 = vpack.c.b16 %v1312, %v1311
        %v1364 = vpack.c.b16 %v1314, %v1313
        %v1365 = vpack.c.b16 %v1316, %v1315
        %v1366 = vpack.c.b16 %v1318, %v1317
        %v1367 = vpack.c.b16 %v1320, %v1319
        %v1368 = vpack.c.b16 %v1322, %v1321
        %v1369 = vpack.c.b16 %v1324, %v1323
        %v1370 = vpack.c.b16 %v1326, %v1325
        %v1371 = vpack.c.b16 %v1328, %v1327
        %v1372 = vpack.c.b16 %v1330, %v1329
        %v1373 = vpack.c.b16 %v1332, %v1331
        %v1374 = vpack.c.b16 %v1334, %v1333
        %1415 = vmatprep.subr.bf16.mxu0 0
        %1416 = vmatpush1.bf16.msra.mxu0 %v1335
        %1417 = vmatprep.subr.bf16.mxu0 0
        %1418 = vmatpush1.bf16.msra.mxu0 %v1336
        %1419 = vmatprep.subr.bf16.mxu0 0
        %1420 = vmatpush1.bf16.msra.mxu0 %v1337
        %1421 = vmatprep.subr.bf16.mxu0 0
        %1422 = vmatpush1.bf16.msra.mxu0 %v1338
        %1423 = vmatprep.subr.bf16.mxu0 0
        %1424 = vmatpush1.bf16.msra.mxu0 %v1339
        %1425 = vmatprep.subr.bf16.mxu0 0
        %1426 = vmatpush1.bf16.msra.mxu0 %v1340
        %1427 = vmatprep.subr.bf16.mxu0 0
        %1428 = vmatpush1.bf16.msra.mxu0 %v1341
        %1429 = vmatprep.subr.bf16.mxu0 0
        %1430 = vmatpush1.bf16.msra.mxu0 %v1342
        %1431 = vmatprep.subr.bf16.mxu0 0
        %1432 = vmatpush1.bf16.msra.mxu0 %v1343
        %1433 = vmatprep.subr.bf16.mxu0 0
        %1434 = vmatpush1.bf16.msra.mxu0 %v1344
        %1435 = vmatprep.subr.bf16.mxu0 0
        %1436 = vmatpush1.bf16.msra.mxu0 %v1345
        %1437 = vmatprep.subr.bf16.mxu0 0
        %1438 = vmatpush1.bf16.msra.mxu0 %v1346
        %1439 = vmatprep.subr.bf16.mxu0 0
        %1440 = vmatpush1.bf16.msra.mxu0 %v1347
        %1441 = vmatprep.subr.bf16.mxu0 0
        %1442 = vmatpush1.bf16.msra.mxu0 %v1348
        %1443 = vmatprep.subr.bf16.mxu0 0
        %1444 = vmatpush1.bf16.msra.mxu0 %v1349
        %1445 = vmatprep.subr.bf16.mxu0 0
        %1446 = vmatpush1.bf16.msra.mxu0 %v1350
        %1447 = vmatprep.mubr.bf16.mxu0 %v1049
        %1448 = vmatmul.mubr.bf16.gmra.mrb[0].mxu0 %v1048
        %v1449 = vpop.f32.mrb[0].mxu0
        %v1450 = vadd.f32 %v1173, %v1449
        %v1451 = vpop.f32.mrb[0].mxu0
        %v1452 = vpop.f32.mrb[0].mxu0
        %v1453 = vadd.f32 %v1173, %v1452
        %v1454 = vpop.f32.mrb[0].mxu0
        %1455 = vmatprep.mubr.bf16.mxu0 %v1054
        %1456 = vmatmul.mubr.bf16.gmra.mrb[0].mxu0 %v1053
        %v1457 = vpop.f32.mrb[0].mxu0
        %v1458 = vadd.f32 %v1173, %v1457
        %v1459 = vpop.f32.mrb[0].mxu0
        %v1460 = vpop.f32.mrb[0].mxu0
        %v1461 = vadd.f32 %v1173, %v1460
        %v1462 = vpop.f32.mrb[0].mxu0
        %1463 = vmatprep.mubr.bf16.mxu0 %v1059
        %1464 = vmatmul.mubr.bf16.gmra.mrb[0].mxu0 %v1058
        %v1465 = vpop.f32.mrb[0].mxu0
        %v1466 = vadd.f32 %v1173, %v1465
        %v1467 = vpop.f32.mrb[0].mxu0
        %v1468 = vpop.f32.mrb[0].mxu0
        %v1469 = vadd.f32 %v1173, %v1468
        %v1470 = vpop.f32.mrb[0].mxu0
        %1471 = vmatprep.mubr.bf16.mxu0 %v1064
        %1472 = vmatmul.mubr.bf16.gmra.mrb[0].mxu0 %v1063
        %v1473 = vpop.f32.mrb[0].mxu0
        %v1474 = vadd.f32 %v1173, %v1473
        %v1475 = vpop.f32.mrb[0].mxu0
        %v1476 = vpop.f32.mrb[0].mxu0
        %v1477 = vadd.f32 %v1173, %v1476
        %v1478 = vpop.f32.mrb[0].mxu0
        %1479 = vmatprep.mubr.bf16.mxu0 %v1069
        %1480 = vmatmul.mubr.bf16.gmra.mrb[0].mxu0 %v1068
        %v1481 = vpop.f32.mrb[0].mxu0
        %v1482 = vadd.f32 %v1173, %v1481
        %v1483 = vpop.f32.mrb[0].mxu0
        %v1484 = vpop.f32.mrb[0].mxu0
        %v1485 = vadd.f32 %v1173, %v1484
        %v1486 = vpop.f32.mrb[0].mxu0
        %1487 = vmatprep.mubr.bf16.mxu0 %v1074
        %1488 = vmatmul.mubr.bf16.gmra.mrb[0].mxu0 %v1073
        %v1489 = vpop.f32.mrb[0].mxu0
        %v1490 = vadd.f32 %v1173, %v1489
        %v1491 = vpop.f32.mrb[0].mxu0
        %v1492 = vpop.f32.mrb[0].mxu0
        %v1493 = vadd.f32 %v1173, %v1492
        %v1494 = vpop.f32.mrb[0].mxu0
        %1495 = vmatprep.mubr.bf16.mxu0 %v1079
        %1496 = vmatmul.mubr.bf16.gmra.mrb[0].mxu0 %v1078
        %v1497 = vpop.f32.mrb[0].mxu0
        %v1498 = vadd.f32 %v1173, %v1497
        %v1499 = vpop.f32.mrb[0].mxu0
        %v1500 = vpop.f32.mrb[0].mxu0
        %v1501 = vadd.f32 %v1173, %v1500
        %v1502 = vpop.f32.mrb[0].mxu0
        %1503 = vmatprep.mubr.bf16.mxu0 %v1084
        %1504 = vmatmul.mubr.bf16.gmra.mrb[0].mxu0 %v1083
        %v1505 = vpop.f32.mrb[0].mxu0
        %v1506 = vadd.f32 %v1173, %v1505
        %v1507 = vpop.f32.mrb[0].mxu0
        %v1508 = vpop.f32.mrb[0].mxu0
        %v1509 = vadd.f32 %v1173, %v1508
        %v1510 = vpop.f32.mrb[0].mxu0
        %1511 = vdwg.mxu0
        %1512 = vmatprep.subr.bf16.mxu0 0
        %1513 = vmatpush1.bf16.msra.mxu0 %v1351
        %1514 = vmatprep.subr.bf16.mxu0 0
        %1515 = vmatpush1.bf16.msra.mxu0 %v1352
        %1516 = vmatprep.subr.bf16.mxu0 0
        %1517 = vmatpush1.bf16.msra.mxu0 %v1353
        %1518 = vmatprep.subr.bf16.mxu0 0
        %1519 = vmatpush1.bf16.msra.mxu0 %v1354
        %1520 = vmatprep.subr.bf16.mxu0 0
        %1521 = vmatpush1.bf16.msra.mxu0 %v1355
        %1522 = vmatprep.subr.bf16.mxu0 0
        %1523 = vmatpush1.bf16.msra.mxu0 %v1356
        %1524 = vmatprep.subr.bf16.mxu0 0
        %1525 = vmatpush1.bf16.msra.mxu0 %v1357
        %1526 = vmatprep.subr.bf16.mxu0 0
        %1527 = vmatpush1.bf16.msra.mxu0 %v1358
        %1528 = vmatprep.subr.bf16.mxu0 0
        %1529 = vmatpush1.bf16.msra.mxu0 %v1359
        %1530 = vmatprep.subr.bf16.mxu0 0
        %1531 = vmatpush1.bf16.msra.mxu0 %v1360
        %1532 = vmatprep.subr.bf16.mxu0 0
        %1533 = vmatpush1.bf16.msra.mxu0 %v1361
        %1534 = vmatprep.subr.bf16.mxu0 0
        %1535 = vmatpush1.bf16.msra.mxu0 %v1362
        %1536 = vmatprep.subr.bf16.mxu0 0
        %1537 = vmatpush1.bf16.msra.mxu0 %v1363
        %1538 = vmatprep.subr.bf16.mxu0 0
        %1539 = vmatpush1.bf16.msra.mxu0 %v1364
        %1540 = vmatprep.subr.bf16.mxu0 0
        %1541 = vmatpush1.bf16.msra.mxu0 %v1365
        %1542 = vmatprep.subr.bf16.mxu0 0
        %1543 = vmatpush1.bf16.msra.mxu0 %v1366
        %1544 = vmatprep.mubr.bf16.mxu0 %v1051
        %1545 = vmatmul.mubr.bf16.gmra.mrb[0].mxu0 %v1050
        %v1546 = vpop.f32.mrb[0].mxu0
        %v1547 = vadd.f32 %v1450, %v1546
        %v1548 = vpop.f32.mrb[0].mxu0
        %v1549 = vpop.f32.mrb[0].mxu0
        %v1550 = vadd.f32 %v1453, %v1549
        %v1551 = vpop.f32.mrb[0].mxu0
        %1552 = vmatprep.mubr.bf16.mxu0 %v1056
        %1553 = vmatmul.mubr.bf16.gmra.mrb[0].mxu0 %v1055
        %v1554 = vpop.f32.mrb[0].mxu0
        %v1555 = vadd.f32 %v1458, %v1554
        %v1556 = vpop.f32.mrb[0].mxu0
        %v1557 = vpop.f32.mrb[0].mxu0
        %v1558 = vadd.f32 %v1461, %v1557
        %v1559 = vpop.f32.mrb[0].mxu0
        %1560 = vmatprep.mubr.bf16.mxu0 %v1061
        %1561 = vmatmul.mubr.bf16.gmra.mrb[0].mxu0 %v1060
        %v1562 = vpop.f32.mrb[0].mxu0
        %v1563 = vadd.f32 %v1466, %v1562
        %v1564 = vpop.f32.mrb[0].mxu0
        %v1565 = vpop.f32.mrb[0].mxu0
        %v1566 = vadd.f32 %v1469, %v1565
        %v1567 = vpop.f32.mrb[0].mxu0
        %1568 = vmatprep.mubr.bf16.mxu0 %v1066
        %1569 = vmatmul.mubr.bf16.gmra.mrb[0].mxu0 %v1065
        %v1570 = vpop.f32.mrb[0].mxu0
        %v1571 = vadd.f32 %v1474, %v1570
        %v1572 = vpop.f32.mrb[0].mxu0
        %v1573 = vpop.f32.mrb[0].mxu0
        %v1574 = vadd.f32 %v1477, %v1573
        %v1575 = vpop.f32.mrb[0].mxu0
        %1576 = vmatprep.mubr.bf16.mxu0 %v1071
        %1577 = vmatmul.mubr.bf16.gmra.mrb[0].mxu0 %v1070
        %v1578 = vpop.f32.mrb[0].mxu0
        %v1579 = vadd.f32 %v1482, %v1578
        %v1580 = vpop.f32.mrb[0].mxu0
        %v1581 = vpop.f32.mrb[0].mxu0
        %v1582 = vadd.f32 %v1485, %v1581
        %v1583 = vpop.f32.mrb[0].mxu0
        %1584 = vmatprep.mubr.bf16.mxu0 %v1076
        %1585 = vmatmul.mubr.bf16.gmra.mrb[0].mxu0 %v1075
        %v1586 = vpop.f32.mrb[0].mxu0
        %v1587 = vadd.f32 %v1490, %v1586
        %v1588 = vpop.f32.mrb[0].mxu0
        %v1589 = vpop.f32.mrb[0].mxu0
        %v1590 = vadd.f32 %v1493, %v1589
        %v1591 = vpop.f32.mrb[0].mxu0
        %1592 = vmatprep.mubr.bf16.mxu0 %v1081
        %1593 = vmatmul.mubr.bf16.gmra.mrb[0].mxu0 %v1080
        %v1594 = vpop.f32.mrb[0].mxu0
        %v1595 = vadd.f32 %v1498, %v1594
        %v1596 = vpop.f32.mrb[0].mxu0
        %v1597 = vpop.f32.mrb[0].mxu0
        %v1598 = vadd.f32 %v1501, %v1597
        %v1599 = vpop.f32.mrb[0].mxu0
        %1600 = vmatprep.mubr.bf16.mxu0 %v1086
        %1601 = vmatmul.mubr.bf16.gmra.mrb[0].mxu0 %v1085
        %v1602 = vpop.f32.mrb[0].mxu0
        %v1603 = vadd.f32 %v1506, %v1602
        %v1604 = vpop.f32.mrb[0].mxu0
        %v1605 = vpop.f32.mrb[0].mxu0
        %v1606 = vadd.f32 %v1509, %v1605
        %v1607 = vpop.f32.mrb[0].mxu0
        %1608 = vdwg.mxu0
        %1609 = vmatprep.subr.bf16.mxu0 0
        %1610 = vmatpush1.bf16.msra.mxu0 %v1367
        %1611 = vmatprep.subr.bf16.mxu0 0
        %1612 = vmatpush1.bf16.msra.mxu0 %v1368
        %1613 = vmatprep.subr.bf16.mxu0 0
        %1614 = vmatpush1.bf16.msra.mxu0 %v1369
        %1615 = vmatprep.subr.bf16.mxu0 0
        %1616 = vmatpush1.bf16.msra.mxu0 %v1370
        %1617 = vmatprep.subr.bf16.mxu0 0
        %1618 = vmatpush1.bf16.msra.mxu0 %v1371
        %1619 = vmatprep.subr.bf16.mxu0 0
        %1620 = vmatpush1.bf16.msra.mxu0 %v1372
        %1621 = vmatprep.subr.bf16.mxu0 0
        %1622 = vmatpush1.bf16.msra.mxu0 %v1373
        %1623 = vmatprep.subr.bf16.mxu0 0
        %1624 = vmatpush1.bf16.msra.mxu0 %v1374
        %1625 = vmatprep.subr.bf16.mxu0 0
        %1626 = vmatpush1.bf16.msra.mxu0 0
        %1627 = vmatprep.subr.bf16.mxu0 0
        %1628 = vmatpush1.bf16.msra.mxu0 0
        %1629 = vmatprep.subr.bf16.mxu0 0
        %1630 = vmatpush1.bf16.msra.mxu0 0
        %1631 = vmatprep.subr.bf16.mxu0 0
        %1632 = vmatpush1.bf16.msra.mxu0 0
        %1633 = vmatprep.subr.bf16.mxu0 0
        %1634 = vmatpush1.bf16.msra.mxu0 0
        %1635 = vmatprep.subr.bf16.mxu0 0
        %1636 = vmatpush1.bf16.msra.mxu0 0
        %1637 = vmatprep.subr.bf16.mxu0 0
        %1638 = vmatpush1.bf16.msra.mxu0 0
        %1639 = vmatprep.subr.bf16.mxu0 0
        %1640 = vmatpush1.bf16.msra.mxu0 0
        %1641 = vmatprep.mubr.bf16.mxu0 0
        %1642 = vmatmul.mubr.bf16.gmra.mrb[0].mxu0 %v1052
        %v1643 = vpop.f32.mrb[0].mxu0
        %v1644 = vadd.f32 %v1547, %v1643
        %v1645 = vpop.f32.mrb[0].mxu0
        %v1646 = vpop.f32.mrb[0].mxu0
        %v1647 = vadd.f32 %v1550, %v1646
        %v1648 = vpop.f32.mrb[0].mxu0
        %1649 = vmatprep.mubr.bf16.mxu0 0
        %1650 = vmatmul.mubr.bf16.gmra.mrb[0].mxu0 %v1057
        %v1651 = vpop.f32.mrb[0].mxu0
        %v1652 = vadd.f32 %v1555, %v1651
        %v1653 = vpop.f32.mrb[0].mxu0
        %v1654 = vpop.f32.mrb[0].mxu0
        %v1655 = vadd.f32 %v1558, %v1654
        %v1656 = vpop.f32.mrb[0].mxu0
        %1657 = vmatprep.mubr.bf16.mxu0 0
        %1658 = vmatmul.mubr.bf16.gmra.mrb[0].mxu0 %v1062
        %v1659 = vpop.f32.mrb[0].mxu0
        %v1660 = vadd.f32 %v1563, %v1659
        %v1661 = vpop.f32.mrb[0].mxu0
        %v1662 = vpop.f32.mrb[0].mxu0
        %v1663 = vadd.f32 %v1566, %v1662
        %v1664 = vpop.f32.mrb[0].mxu0
        %1665 = vmatprep.mubr.bf16.mxu0 0
        %1666 = vmatmul.mubr.bf16.gmra.mrb[0].mxu0 %v1067
        %v1667 = vpop.f32.mrb[0].mxu0
        %v1668 = vadd.f32 %v1571, %v1667
        %v1669 = vpop.f32.mrb[0].mxu0
        %v1670 = vpop.f32.mrb[0].mxu0
        %v1671 = vadd.f32 %v1574, %v1670
        %v1672 = vpop.f32.mrb[0].mxu0
        %1673 = vmatprep.mubr.bf16.mxu0 0
        %1674 = vmatmul.mubr.bf16.gmra.mrb[0].mxu0 %v1072
        %v1675 = vpop.f32.mrb[0].mxu0
        %v1676 = vadd.f32 %v1579, %v1675
        %v1677 = vpop.f32.mrb[0].mxu0
        %v1678 = vpop.f32.mrb[0].mxu0
        %v1679 = vadd.f32 %v1582, %v1678
        %v1680 = vpop.f32.mrb[0].mxu0
        %1681 = vmatprep.mubr.bf16.mxu0 0
        %1682 = vmatmul.mubr.bf16.gmra.mrb[0].mxu0 %v1077
        %v1683 = vpop.f32.mrb[0].mxu0
        %v1684 = vadd.f32 %v1587, %v1683
        %v1685 = vpop.f32.mrb[0].mxu0
        %v1686 = vpop.f32.mrb[0].mxu0
        %v1687 = vadd.f32 %v1590, %v1686
        %v1688 = vpop.f32.mrb[0].mxu0
        %1689 = vmatprep.mubr.bf16.mxu0 0
        %1690 = vmatmul.mubr.bf16.gmra.mrb[0].mxu0 %v1082
        %v1691 = vpop.f32.mrb[0].mxu0
        %v1692 = vadd.f32 %v1595, %v1691
        %v1693 = vpop.f32.mrb[0].mxu0
        %v1694 = vpop.f32.mrb[0].mxu0
        %v1695 = vadd.f32 %v1598, %v1694
        %v1696 = vpop.f32.mrb[0].mxu0
        %1697 = vmatprep.mubr.bf16.mxu0 0
        %1698 = vmatmul.mubr.bf16.gmra.mrb[0].mxu0 %v1087
        %v1699 = vpop.f32.mrb[0].mxu0
        %v1700 = vadd.f32 %v1603, %v1699
        %v1701 = vpop.f32.mrb[0].mxu0
        %v1702 = vpop.f32.mrb[0].mxu0
        %v1703 = vadd.f32 %v1606, %v1702
        %v1704 = vpop.f32.mrb[0].mxu0
        %1705 = vdwg.mxu0
        %v1706 = vmax.f32 %v1644, 0.0
        %v1707 = vmax.f32 %v1647, 0.0
        %v1708 = vmax.f32 %v1652, 0.0
        %v1709 = vmax.f32 %v1655, 0.0
        %v1710 = vmax.f32 %v1660, 0.0
        %v1711 = vmax.f32 %v1663, 0.0
        %v1712 = vmax.f32 %v1668, 0.0
        %v1713 = vmax.f32 %v1671, 0.0
        %v1714 = vmax.f32 %v1676, 0.0
        %v1715 = vmax.f32 %v1679, 0.0
        %v1716 = vmax.f32 %v1684, 0.0
        %v1717 = vmax.f32 %v1687, 0.0
        %v1718 = vmax.f32 %v1692, 0.0
        %v1719 = vmax.f32 %v1695, 0.0
        %v1720 = vmax.f32 %v1700, 0.0
        %v1721 = vmax.f32 %v1703, 0.0
        %v1722 = vpack.c.bf16 %v1707, %v1706
        %v1723 = vpack.c.bf16 %v1709, %v1708
        %v1724 = vpack.c.bf16 %v1711, %v1710
        %v1725 = vpack.c.bf16 %v1713, %v1712
        %v1726 = vpack.c.bf16 %v1715, %v1714
        %v1727 = vpack.c.bf16 %v1717, %v1716
        %v1728 = vpack.c.bf16 %v1719, %v1718
        %v1729 = vpack.c.bf16 %v1721, %v1720
        %v1730 = vld [vmem:[%s5] sm:$0xf]
        %v1731 = vld [vmem:[%s5 + $0x4] sm:$0xf]
        %v1732 = vld [vmem:[%s5 + $0x8] sm:$0xf]
        %v1733 = vld [vmem:[%s5 + $0xc] sm:$0xf]
        %v1734 = vld [vmem:[%s5 + $0x10] sm:$0xf]
        %v1735 = vld [vmem:[%s5 + $0x14] sm:$0xf]
        %v1736 = vld [vmem:[%s5 + $0x18] sm:$0xf]
        %v1737 = vld [vmem:[%s5 + $0x1c] sm:$0xf]
        %v1738 = vld [vmem:[%s5 + $0x20] sm:$0xf]
        %v1739 = vld [vmem:[%s5 + $0x24] sm:$0xf]
        %v1740 = vld [vmem:[%s5 + $0x28] sm:$0xf]
        %v1741 = vld [vmem:[%s5 + $0x2c] sm:$0xf]
        %v1742 = vld [vmem:[%s5 + $0x30] sm:$0xf]
        %v1743 = vld [vmem:[%s5 + $0x34] sm:$0xf]
        %v1744 = vld [vmem:[%s5 + $0x38] sm:$0xf]
        %v1745 = vld [vmem:[%s5 + $0x3c] sm:$0xf]
        %v1746 = vld [vmem:[%s6] sm:$0x1]
        %v1748 = vlaneseq
        %v1749 = vshrl.u32 %v1748, 7
        %v1750 = vsub.s32 0, %v1749
        %v1751 = vrot.slane %v1746, %v1750
        %v1769 = vunpack.c.l.b16 %v1730
        %v1770 = vunpack.c.l.b16 %v1731
        %v1771 = vunpack.c.l.b16 %v1732
        %v1772 = vunpack.c.l.b16 %v1733
        %v1773 = vunpack.c.l.b16 %v1734
        %v1774 = vunpack.c.l.b16 %v1735
        %v1775 = vunpack.c.l.b16 %v1736
        %v1776 = vunpack.c.l.b16 %v1737
        %v1777 = vunpack.c.l.b16 %v1738
        %v1778 = vunpack.c.l.b16 %v1739
        %v1779 = vunpack.c.l.b16 %v1740
        %v1780 = vunpack.c.l.b16 %v1741
        %v1781 = vunpack.c.l.b16 %v1742
        %v1782 = vunpack.c.l.b16 %v1743
        %v1783 = vunpack.c.l.b16 %v1744
        %v1784 = vunpack.c.l.b16 %v1745
        %v1785 = vpack.c.b16 %v1770, %v1769
        %v1786 = vpack.c.b16 %v1772, %v1771
        %v1787 = vpack.c.b16 %v1774, %v1773
        %v1788 = vpack.c.b16 %v1776, %v1775
        %v1789 = vpack.c.b16 %v1778, %v1777
        %v1790 = vpack.c.b16 %v1780, %v1779
        %v1791 = vpack.c.b16 %v1782, %v1781
        %v1792 = vpack.c.b16 %v1784, %v1783
        %1801 = vmatprep.subr.bf16.mxu0 0
        %1802 = vmatpush1.bf16.msra.mxu0 %v1785
        %1803 = vmatprep.subr.bf16.mxu0 0
        %1804 = vmatpush1.bf16.msra.mxu0 %v1786
        %1805 = vmatprep.subr.bf16.mxu0 0
        %1806 = vmatpush1.bf16.msra.mxu0 %v1787
        %1807 = vmatprep.subr.bf16.mxu0 0
        %1808 = vmatpush1.bf16.msra.mxu0 %v1788
        %1809 = vmatprep.subr.bf16.mxu0 0
        %1810 = vmatpush1.bf16.msra.mxu0 %v1789
        %1811 = vmatprep.subr.bf16.mxu0 0
        %1812 = vmatpush1.bf16.msra.mxu0 %v1790
        %1813 = vmatprep.subr.bf16.mxu0 0
        %1814 = vmatpush1.bf16.msra.mxu0 %v1791
        %1815 = vmatprep.subr.bf16.mxu0 0
        %1816 = vmatpush1.bf16.msra.mxu0 %v1792
        %1817 = vmatprep.subr.bf16.mxu0 0
        %1818 = vmatpush1.bf16.msra.mxu0 0
        %1819 = vmatprep.subr.bf16.mxu0 0
        %1820 = vmatpush1.bf16.msra.mxu0 0
        %1821 = vmatprep.subr.bf16.mxu0 0
        %1822 = vmatpush1.bf16.msra.mxu0 0
        %1823 = vmatprep.subr.bf16.mxu0 0
        %1824 = vmatpush1.bf16.msra.mxu0 0
        %1825 = vmatprep.subr.bf16.mxu0 0
        %1826 = vmatpush1.bf16.msra.mxu0 0
        %1827 = vmatprep.subr.bf16.mxu0 0
        %1828 = vmatpush1.bf16.msra.mxu0 0
        %1829 = vmatprep.subr.bf16.mxu0 0
        %1830 = vmatpush1.bf16.msra.mxu0 0
        %1831 = vmatprep.subr.bf16.mxu0 0
        %1832 = vmatpush1.bf16.msra.mxu0 0
        %1833 = vmatprep.mubr.bf16.mxu0 0
        %1834 = vmatmul.mubr.bf16.gmra.mrb[0].mxu0 %v1722
        %v1835 = vpop.f32.mrb[0].mxu0
        %v1836 = vadd.f32 %v1751, %v1835
        %v1837 = vpop.f32.mrb[0].mxu0
        %v1838 = vpop.f32.mrb[0].mxu0
        %v1839 = vadd.f32 %v1751, %v1838
        %v1840 = vpop.f32.mrb[0].mxu0
        %1841 = vmatprep.mubr.bf16.mxu0 0
        %1842 = vmatmul.mubr.bf16.gmra.mrb[0].mxu0 %v1723
        %v1843 = vpop.f32.mrb[0].mxu0
        %v1844 = vadd.f32 %v1751, %v1843
        %v1845 = vpop.f32.mrb[0].mxu0
        %v1846 = vpop.f32.mrb[0].mxu0
        %v1847 = vadd.f32 %v1751, %v1846
        %v1848 = vpop.f32.mrb[0].mxu0
        %1849 = vmatprep.mubr.bf16.mxu0 0
        %1850 = vmatmul.mubr.bf16.gmra.mrb[0].mxu0 %v1724
        %v1851 = vpop.f32.mrb[0].mxu0
        %v1852 = vadd.f32 %v1751, %v1851
        %v1853 = vpop.f32.mrb[0].mxu0
        %v1854 = vpop.f32.mrb[0].mxu0
        %v1855 = vadd.f32 %v1751, %v1854
        %v1856 = vpop.f32.mrb[0].mxu0
        %1857 = vmatprep.mubr.bf16.mxu0 0
        %1858 = vmatmul.mubr.bf16.gmra.mrb[0].mxu0 %v1725
        %v1859 = vpop.f32.mrb[0].mxu0
        %v1860 = vadd.f32 %v1751, %v1859
        %v1861 = vpop.f32.mrb[0].mxu0
        %v1862 = vpop.f32.mrb[0].mxu0
        %v1863 = vadd.f32 %v1751, %v1862
        %v1864 = vpop.f32.mrb[0].mxu0
        %1865 = vmatprep.mubr.bf16.mxu0 0
        %1866 = vmatmul.mubr.bf16.gmra.mrb[0].mxu0 %v1726
        %v1867 = vpop.f32.mrb[0].mxu0
        %v1868 = vadd.f32 %v1751, %v1867
        %v1869 = vpop.f32.mrb[0].mxu0
        %v1870 = vpop.f32.mrb[0].mxu0
        %v1871 = vadd.f32 %v1751, %v1870
        %v1872 = vpop.f32.mrb[0].mxu0
        %1873 = vmatprep.mubr.bf16.mxu0 0
        %1874 = vmatmul.mubr.bf16.gmra.mrb[0].mxu0 %v1727
        %v1875 = vpop.f32.mrb[0].mxu0
        %v1876 = vadd.f32 %v1751, %v1875
        %v1877 = vpop.f32.mrb[0].mxu0
        %v1878 = vpop.f32.mrb[0].mxu0
        %v1879 = vadd.f32 %v1751, %v1878
        %v1880 = vpop.f32.mrb[0].mxu0
        %1881 = vmatprep.mubr.bf16.mxu0 0
        %1882 = vmatmul.mubr.bf16.gmra.mrb[0].mxu0 %v1728
        %v1883 = vpop.f32.mrb[0].mxu0
        %v1884 = vadd.f32 %v1751, %v1883
        %v1885 = vpop.f32.mrb[0].mxu0
        %v1886 = vpop.f32.mrb[0].mxu0
        %v1887 = vadd.f32 %v1751, %v1886
        %v1888 = vpop.f32.mrb[0].mxu0
        %1889 = vmatprep.mubr.bf16.mxu0 0
        %1890 = vmatmul.mubr.bf16.gmra.mrb[0].mxu0 %v1729
        %v1891 = vpop.f32.mrb[0].mxu0
        %v1892 = vadd.f32 %v1751, %v1891
        %v1893 = vpop.f32.mrb[0].mxu0
        %v1894 = vpop.f32.mrb[0].mxu0
        %v1895 = vadd.f32 %v1751, %v1894
        %v1896 = vpop.f32.mrb[0].mxu0
        %1897 = vdwg.mxu0
        %1898 = vst [vmem:[%s295] sm:$0xff] %v1836
        %1899 = vst [vmem:[%s295 + $0x8] sm:$0xff] %v1839
        %1900 = vst [vmem:[%s295 + $0x10] sm:$0xff] %v1844
        %1901 = vst [vmem:[%s295 + $0x18] sm:$0xff] %v1847
        %1902 = vst [vmem:[%s295 + $0x20] sm:$0xff] %v1852
        %1903 = vst [vmem:[%s295 + $0x28] sm:$0xff] %v1855
        %1904 = vst [vmem:[%s295 + $0x30] sm:$0xff] %v1860
        %1905 = vst [vmem:[%s295 + $0x38] sm:$0xff] %v1863
        %1906 = vst [vmem:[%s295 + $0x40] sm:$0xff] %v1868
        %1907 = vst [vmem:[%s295 + $0x48] sm:$0xff] %v1871
        %1908 = vst [vmem:[%s295 + $0x50] sm:$0xff] %v1876
        %1909 = vst [vmem:[%s295 + $0x58] sm:$0xff] %v1879
        %1910 = vst [vmem:[%s295 + $0x60] sm:$0xff] %v1884
        %1911 = vst [vmem:[%s295 + $0x68] sm:$0xff] %v1887
        %1912 = vst [vmem:[%s295 + $0x70] sm:$0xff] %v1892
        %1913 = vst [vmem:[%s295 + $0x78] sm:$0xff] %v1895
        %s1914 = smul.u32 16, %s19
        %p1915 = scmp.lt.s32.totalorder %s1914, 31
        %s1916 = scalar_select %p1915, %s1914, 31
        %s1917 = smul.addr %s1916, 8
        %s1918 = scalar_lea.vmem %s7, %s1917
        // Predicated region
        $region53: #{light_mlp_forward.1} parent=47 // pred_check
          %p1919 = pneg %p189
        $region54: #{light_mlp_forward.1} parent=47 // pred_check_branch
          %1921 = sbr.rel (%p1919) target = $region56
        $region55: #{light_mlp_forward.1} parent=47 // pred_region
          %s1922 = smul.u32 16, %s19
        $region56: #{light_mlp_forward.1} parent=47 // pred_fallthru
          _
      $region48: #{light_mlp_forward.1} parent=5 // pred_fallthru
        _
      %p1923 = scmp.le.s32.totalorder 2, %s14
      // Predicated region
      $region57: #{light_mlp_forward.1} parent=5 // pred_check
        %p1924 = pneg %p1923
      $region58: #{light_mlp_forward.1} parent=5 // pred_check_branch
        %1926 = sbr.rel (%p1924) target = $region60
      $region59: #{light_mlp_forward.1} parent=5 // pred_region
        %s1927 = ssub.s32 %s14, 2
        // Predicated region
        $region61: #{light_mlp_forward.1} parent=59 // pred_check
          %p1928 = pneg %p195
        $region62: #{light_mlp_forward.1} parent=59 // pred_check_branch
          %1930 = sbr.rel (%p1928) target = $region64
        $region63: #{light_mlp_forward.1} parent=59 // pred_region
          %s1931 = smul.u32 16, %s20
          %p1932 = scmp.lt.s32.totalorder %s1931, 31
          %s1933 = scalar_select %p1932, %s1931, 31
          %s1934 = smul.addr %s1933, 8
          %s1935 = scalar_lea.vmem %s7, %s1934
        $region64: #{light_mlp_forward.1} parent=59 // pred_fallthru
          _
      $region60: #{light_mlp_forward.1} parent=5 // pred_fallthru
        _
    $region6: #{light_mlp_forward.1} parent=1 // loop_footer
      %s18 = sadd.s32 1, %s14
    $region7: #{light_mlp_forward.1} parent=1 // loop_footer_branch
      %13 = sbr.rel target = $region3
    $region8: #{light_mlp_forward.1} parent=1 // loop_exit
      _
    %1936 = vsyncpa [#allocation3], 1
    %s1937 = scalar_lea.sflag [#allocation3], 1
    %1938 = vsyncpa %s1937, 1

</llo_original>
